<compile_context>
chip_gen: v7x
topology: tpu7x:2x2x1
jax: 0.10.0
libtpu: 0.0.40
codegen_flags: <defaults>
</compile_context>

<pallas_src>
import functools

import jax
import jax.numpy as jnp
from jax.experimental import pallas as pl
from jax.experimental.pallas import tpu as pltpu


# ----------------------------------------------------------------------------
# tile-size helpers
# ----------------------------------------------------------------------------
def _pick_conv_row_tile(Ho, Wo, Wph, C):
    """Rows of output per grid step: target M = TH*Wo ~ 256 MXU rows while
    keeping the bf16 input block around <= 2 MiB; TH must divide Ho and keep
    the output block sublane-aligned (TH*Wo % 8 == 0) unless TH == Ho."""
    target = max(1, 256 // max(1, Wo))
    budget = max(1, (2 << 20) // max(1, 2 * Wph * 2 * C * 2))
    best = Ho
    for th in range(min(Ho, target, budget), 0, -1):
        if Ho % th == 0 and (th * Wo) % 8 == 0:
            best = th
            break
    return best


def _pick_pool_row_tile(Ho, Wo, C):
    """Keep the per-step f32 input block around <= 1 MiB; TH divides Ho."""
    bytes_per_row = 2 * Wo * 2 * C * 4
    th = max(1, (1 << 20) // max(1, bytes_per_row))
    th = min(th, Ho)
    while Ho % th:
        th -= 1
    return th


# ----------------------------------------------------------------------------
# use_conv=True : Conv2d(C, Cout, kernel=3, stride=2, padding=1)
# ----------------------------------------------------------------------------
def _conv_kernel(x_ref, xh_ref, w_ref, b_ref, o_ref, acc_ref, *, TH, Wo, C):
    """One (batch, output-row-tile) grid step.

    x_ref  : [1, TH, 2, Wo+1, 2C] bf16  phase-split padded input,
                                        rows P in [t*TH, (t+1)*TH)
                                        (padded row = 2P + r, lane = s*C + c
                                         for padded col 2Q + s)
    xh_ref : [1, 1, 1, Wo+1, 2C]  bf16  halo: row-phase-0 plane at P=(t+1)*TH
    w_ref  : [3, 3C, CoutP]       bf16  per kh: [w(kh,0) ; w(kh,1) ; w(kh,2)]
    b_ref  : [1, CoutP]           f32
    o_ref  : [1, TH*Wo, CoutP]
    acc_ref: [TH*Wo, CoutP]       f32 VMEM scratch accumulator
    """
    twoC = 2 * C
    M = TH * Wo
    acc_ref[...] = jnp.zeros_like(acc_ref)

    def mm(lhs, rhs):
        return jnp.dot(lhs, rhs, preferred_element_type=jnp.float32)

    # Static 3-iteration unroll over kh.  For each kh:
    #   taps (kh, kw=0) and (kh, kw=1) are one contiguous 2C lane window
    #   of col-pair Q = S            -> one K=2C matmul;
    #   tap  (kh, kw=2) is the first C lanes of col-pair Q = S+1 -> K=C matmul.
    for kh in range(3):
        r = kh % 2                      # padded-row phase of this tap row
        wa = w_ref[kh, :twoC, :]        # [2C, CoutP]
        wb = w_ref[kh, twoC:, :]        # [C,  CoutP]
        if kh < 2:
            # P = R : rows 0..TH-1 of the main block.
            la = x_ref[0, :, r, :Wo, :].reshape(M, twoC)
            lb = x_ref[0, :, r, 1:, :C].reshape(M, C)
            acc_ref[...] += mm(la, wa) + mm(lb, wb)
        else:
            # kh == 2 : P = R + 1 -> rows 1..TH-1 of the main block plus the
            # single halo row provided by xh_ref (last output row of the tile).
            if TH > 1:
                la = x_ref[0, 1:, r, :Wo, :].reshape((TH - 1) * Wo, twoC)
                lb = x_ref[0, 1:, r, 1:, :C].reshape((TH - 1) * Wo, C)
                acc_ref[pl.ds(0, (TH - 1) * Wo), :] += mm(la, wa) + mm(lb, wb)
            ha = xh_ref[0, 0, 0, :Wo, :].reshape(Wo, twoC)
            hb = xh_ref[0, 0, 0, 1:, :C].reshape(Wo, C)
            acc_ref[pl.ds((TH - 1) * Wo, Wo), :] += mm(ha, wa) + mm(hb, wb)

    o_ref[0] = (acc_ref[...] + b_ref[...]).astype(o_ref.dtype)


@functools.partial(jax.jit, static_argnames=("row_tile",))
def downsample_conv(x, weight, bias, *, row_tile=None):
    """x: [B, C, H, W] f32, weight: [Cout, C, 3, 3], bias: [Cout].
    Returns [B, Cout, (H+1)//2, (W+1)//2] (matches Conv2d(3, stride=2, pad=1))."""
    B, C, H, W = x.shape
    Cout = weight.shape[0]
    Ho, Wo = (H + 1) // 2, (W + 1) // 2
    Hph, Wph = Ho + 1, Wo + 1
    CoutP = ((Cout + 127) // 128) * 128

    # bf16 activations: halves DMA bytes and is the native MXU operand dtype.
    xh = jnp.transpose(x.astype(jnp.bfloat16), (0, 2, 3, 1))          # NHWC
    # Conv padding (=1) plus bottom/right zero pad up to even sizes (odd H/W).
    xp = jnp.pad(xh, ((0, 0), (1, 2 * Ho - H + 1), (1, 2 * Wo - W + 1), (0, 0)))
    # Free reshape (no data movement): xr[b, P, r, Q, s*C + c] = xp[b, 2P+r, 2Q+s, c]
    xr = xp.reshape(B, Hph, 2, Wph, 2 * C)

    if row_tile is None:
        TH = _pick_conv_row_tile(Ho, Wo, Wph, C)
    else:
        TH = int(row_tile)
        assert Ho % TH == 0 and (TH == Ho or (TH * Wo) % 8 == 0)
    nt = Ho // TH

    # weights: [Cout, C, 3, 3] -> [3, 3C, CoutP] bf16, ordered so the kw=0/kw=1
    # taps form one contiguous K=2C slab matching xr's lane layout.
    wt = jnp.transpose(weight, (2, 3, 1, 0))                           # [3,3,C,Cout]
    wk = jnp.concatenate([wt[:, 0:2].reshape(3, 2 * C, Cout), wt[:, 2]], axis=1)
    wk = jnp.pad(wk, ((0, 0), (0, 0), (0, CoutP - Cout))).astype(jnp.bfloat16)
    b2 = jnp.pad(bias, (0, CoutP - Cout)).reshape(1, CoutP).astype(jnp.float32)

    out = pl.pallas_call(
        functools.partial(_conv_kernel, TH=TH, Wo=Wo, C=C),
        out_shape=jax.ShapeDtypeStruct((B, Ho * Wo, CoutP), x.dtype),
        grid_spec=pltpu.PrefetchScalarGridSpec(
            num_scalar_prefetch=0,
            grid=(B, nt),
            in_specs=[
                # main input tile: rows P in [t*TH, (t+1)*TH) of both phases
                pl.BlockSpec((1, TH, 2, Wph, 2 * C),
                             lambda b, t: (b, t, 0, 0, 0)),
                # one-row halo (row-phase 0 at P = (t+1)*TH) for the kh=2 taps
                pl.BlockSpec((1, 1, 1, Wph, 2 * C),
                             lambda b, t: (b, (t + 1) * TH, 0, 0, 0)),
                # grid-invariant weights / bias
                pl.BlockSpec((3, 3 * C, CoutP), lambda b, t: (0, 0, 0)),
                pl.BlockSpec((1, CoutP), lambda b, t: (0, 0)),
            ],
            out_specs=pl.BlockSpec((1, TH * Wo, CoutP), lambda b, t: (b, t, 0)),
            scratch_shapes=[pltpu.VMEM((TH * Wo, CoutP), jnp.float32)],
        ),
        compiler_params=pltpu.CompilerParams(
            dimension_semantics=("parallel", "parallel")),
    )(xr, xr, wk, b2)

    out = out.reshape(B, Ho, Wo, CoutP)[..., :Cout]
    return jnp.transpose(out, (0, 3, 1, 2))                           # NCHW


# ----------------------------------------------------------------------------
# use_conv=False : AvgPool2d(kernel_size=2, stride=2)
# ----------------------------------------------------------------------------
def _pool_kernel(x_ref, o_ref, *, C):
    """x_ref: [1, TH, 2, Wo, 2C] f32 (rows 2R / 2R+1, cols 2S / 2S+1 on lanes);
    o_ref: [1, TH, Wo, C]."""
    s = (x_ref[0, :, 0, :, :C] + x_ref[0, :, 0, :, C:]
         + x_ref[0, :, 1, :, :C] + x_ref[0, :, 1, :, C:])
    o_ref[0] = (0.25 * s).astype(o_ref.dtype)


@functools.partial(jax.jit, static_argnames=("row_tile",))
def downsample_pool(x, *, row_tile=None):
    """x: [B, C, H, W] -> [B, C, H//2, W//2] (AvgPool2d(2, 2); floors odd dims)."""
    B, C, H, W = x.shape
    Ho, Wo = H // 2, W // 2
    x = x[:, :, :2 * Ho, :2 * Wo]
    xh = jnp.transpose(x, (0, 2, 3, 1))                  # NHWC (one copy pass)
    xr = xh.reshape(B, Ho, 2, Wo, 2 * C)                 # free reshape, no copy

    if row_tile is None:
        TH = _pick_pool_row_tile(Ho, Wo, C)
    else:
        TH = int(row_tile)
        assert Ho % TH == 0
    nt = Ho // TH

    out = pl.pallas_call(
        functools.partial(_pool_kernel, C=C),
        out_shape=jax.ShapeDtypeStruct((B, Ho, Wo, C), x.dtype),
        grid_spec=pltpu.PrefetchScalarGridSpec(
            num_scalar_prefetch=0,
            grid=(B, nt),
            in_specs=[pl.BlockSpec((1, TH, 2, Wo, 2 * C),
                                   lambda b, t: (b, t, 0, 0, 0))],
            out_specs=pl.BlockSpec((1, TH, Wo, C), lambda b, t: (b, t, 0, 0)),
        ),
        compiler_params=pltpu.CompilerParams(
            dimension_semantics=("parallel", "parallel")),
    )(xr)

    return jnp.transpose(out, (0, 3, 1, 2))              # back to NCHW


# ----------------------------------------------------------------------------
# Module-level dispatch (mirrors Downsample.forward, dims=2)
# ----------------------------------------------------------------------------
def downsample(x, *, use_conv, weight=None, bias=None):
    if use_conv:
        return downsample_conv(x, weight, bias)
    return downsample_pool(x)


# ----------------------------------------------------------------------------
if __name__ == "__main__":
    B, C, H, W = 2, 128, 16, 16
    Cout = 128                                           # out_channels (== channels)

    key = jax.random.PRNGKey(0)
    kx, kw, kb = jax.random.split(key, 3)
    x = jax.random.normal(kx, (B, C, H, W), jnp.float32)
    weight = jax.random.normal(kw, (Cout, C, 3, 3), jnp.float32) / ((9 * C) ** 0.5)
    bias = 0.1 * jax.random.normal(kb, (Cout,), jnp.float32)

    def conv_ref(xx, ww, bb):
        return jax.lax.conv_general_dilated(
            xx, ww, window_strides=(2, 2), padding=((1, 1), (1, 1)),
            dimension_numbers=("NCHW", "OIHW", "NCHW")) + bb[None, :, None, None]

    # ---- use_conv=True, default (adaptive) row tile ----
    out_conv = jax.block_until_ready(
        downsample(x, use_conv=True, weight=weight, bias=bias))
    ref_c = conv_ref(x, weight, bias)
    assert out_conv.shape == (B, Cout, H // 2, W // 2)
    # bf16 MXU operands vs f32 reference -> loosened tolerance.
    assert jnp.allclose(out_conv, ref_c, rtol=5e-2, atol=5e-2), \
        f"conv max abs err = {jnp.max(jnp.abs(out_conv - ref_c))}"

    # ---- use_conv=True, explicit small row tile (exercises multi-tile + halo) ----
    out_conv_t = jax.block_until_ready(
        downsample_conv(x, weight, bias, row_tile=2))
    assert jnp.allclose(out_conv_t, ref_c, rtol=5e-2, atol=5e-2), \
        f"conv(row_tile=2) max abs err = {jnp.max(jnp.abs(out_conv_t - ref_c))}"

    # ---- use_conv=True, odd spatial dims (Conv2d stride=2 pad=1 -> (H+1)//2) ----
    x_odd = jax.random.normal(jax.random.PRNGKey(1), (1, C, 15, 15), jnp.float32)
    out_odd = jax.block_until_ready(downsample_conv(x_odd, weight, bias))
    ref_odd = conv_ref(x_odd, weight, bias)
    assert out_odd.shape == (1, Cout, 8, 8)
    assert jnp.allclose(out_odd, ref_odd, rtol=5e-2, atol=5e-2), \
        f"conv(odd) max abs err = {jnp.max(jnp.abs(out_odd - ref_odd))}"

    # ---- use_conv=False ----
    out_pool = jax.block_until_ready(downsample(x, use_conv=False))
    ref_pool = x.reshape(B, C, H // 2, 2, W // 2, 2).mean(axis=(3, 5))
    assert out_pool.shape == (B, C, H // 2, W // 2)
    assert jnp.allclose(out_pool, ref_pool, rtol=1e-5, atol=1e-5), \
        f"pool max abs err = {jnp.max(jnp.abs(out_pool - ref_pool))}"

    # ---- use_conv=False, odd spatial dims (AvgPool2d floors) ----
    out_podd = jax.block_until_ready(downsample_pool(x_odd))
    ref_podd = x_odd[:, :, :14, :14].reshape(1, C, 7, 2, 7, 2).mean(axis=(3, 5))
    assert out_podd.shape == (1, C, 7, 7)
    assert jnp.allclose(out_podd, ref_podd, rtol=1e-5, atol=1e-5), \
        f"pool(odd) max abs err = {jnp.max(jnp.abs(out_podd - ref_podd))}"

    print("KERNEL_OK")
</pallas_src>

<mosaic_0001>
module attributes {stable_mosaic.version = 11 : i64} {
  func.func @_conv_kernel(%arg0: i32, %arg1: i32, %arg2: memref<1x8x2x9x256xbf16, #tpu.memory_space<vmem>>, %arg3: memref<1x1x1x9x256xbf16, #tpu.memory_space<vmem>>, %arg4: memref<3x384x128xbf16, #tpu.memory_space<vmem>>, %arg5: memref<1x128xf32, #tpu.memory_space<vmem>>, %arg6: memref<1x64x128xf32, #tpu.memory_space<vmem>>, %arg7: memref<64x128xf32, #tpu.memory_space<vmem>>) attributes {dimension_semantics = [#tpu.dimension_semantics<parallel>, #tpu.dimension_semantics<parallel>], iteration_bounds = array<i64: 2, 1>, scalar_prefetch = 0 : i64, scratch_operands = 1 : i64, tpu.core_type = #tpu.core_type<tc>, window_params = [{transform_indices = @transform_0, window_bounds = array<i64: 1, 8, 2, 9, 256>}, {transform_indices = @transform_1, window_bounds = array<i64: 1, 1, 1, 9, 256>}, {pipeline_mode = #tpu.pipeline_mode<synchronous>, transform_indices = @transform_2, window_bounds = array<i64: 3, 384, 128>}, {pipeline_mode = #tpu.pipeline_mode<synchronous>, transform_indices = @transform_3, window_bounds = array<i64: 1, 128>}, {transform_indices = @transform_4, window_bounds = array<i64: 1, 64, 128>}]} {
    %cst = arith.constant 0.000000e+00 : f32
    %0 = vector.broadcast %cst : f32 to vector<64x128xf32>
    %c0 = arith.constant 0 : index
    %c0_0 = arith.constant 0 : index
    %1 = vector.load %arg7[%c0, %c0_0] : memref<64x128xf32, #tpu.memory_space<vmem>>, vector<64x128xf32>
    tpu.vector_store %arg7[%c0, %c0_0], %0 {strides = array<i32>} : memref<64x128xf32, #tpu.memory_space<vmem>>, vector<64x128xf32>,
    %c0_1 = arith.constant 0 : index
    %c0_2 = arith.constant 0 : index
    %c0_3 = arith.constant 0 : index
    %2 = vector.load %arg4[%c0_1, %c0_2, %c0_3] : memref<3x384x128xbf16, #tpu.memory_space<vmem>>, vector<1x256x128xbf16>
    %3 = vector.shape_cast %2 : vector<1x256x128xbf16> to vector<256x128xbf16>
    %c0_4 = arith.constant 0 : index
    %c256 = arith.constant 256 : index
    %c0_5 = arith.constant 0 : index
    %4 = vector.load %arg4[%c0_4, %c256, %c0_5] : memref<3x384x128xbf16, #tpu.memory_space<vmem>>, vector<1x128x128xbf16>
    %5 = vector.shape_cast %4 : vector<1x128x128xbf16> to vector<128x128xbf16>
    %c0_6 = arith.constant 0 : index
    %c0_7 = arith.constant 0 : index
    %c0_8 = arith.constant 0 : index
    %c0_9 = arith.constant 0 : index
    %c0_10 = arith.constant 0 : index
    %6 = vector.load %arg2[%c0_6, %c0_7, %c0_8, %c0_9, %c0_10] : memref<1x8x2x9x256xbf16, #tpu.memory_space<vmem>>, vector<1x8x1x8x256xbf16>
    %7 = vector.shape_cast %6 : vector<1x8x1x8x256xbf16> to vector<8x8x256xbf16>
    %8 = vector.shape_cast %7 : vector<8x8x256xbf16> to vector<64x256xbf16>
    %c0_11 = arith.constant 0 : index
    %c0_12 = arith.constant 0 : index
    %c0_13 = arith.constant 0 : index
    %c1 = arith.constant 1 : index
    %c0_14 = arith.constant 0 : index
    %9 = vector.load %arg2[%c0_11, %c0_12, %c0_13, %c1, %c0_14] : memref<1x8x2x9x256xbf16, #tpu.memory_space<vmem>>, vector<1x8x1x8x128xbf16>
    %10 = vector.shape_cast %9 : vector<1x8x1x8x128xbf16> to vector<8x8x128xbf16>
    %11 = vector.shape_cast %10 : vector<8x8x128xbf16> to vector<64x128xbf16>
    %c0_15 = arith.constant 0 : index
    %c0_16 = arith.constant 0 : index
    %12 = vector.load %arg7[%c0_15, %c0_16] : memref<64x128xf32, #tpu.memory_space<vmem>>, vector<64x128xf32>
    %cst_17 = arith.constant dense<0.000000e+00> : vector<64x128xf32>
    %13 = tpu.matmul %8, %3, %cst_17 {dimension_numbers = #tpu.dot_dimension_numbers<[1], [0], [0], [1], [0, 0, 1, 1], [], []>} : vector<64x256xbf16>, vector<256x128xbf16>, vector<64x128xf32> -> vector<64x128xf32>
    %cst_18 = arith.constant dense<0.000000e+00> : vector<64x128xf32>
    %14 = tpu.matmul %11, %5, %cst_18 {dimension_numbers = #tpu.dot_dimension_numbers<[1], [0], [0], [1], [0, 0, 1, 1], [], []>} : vector<64x128xbf16>, vector<128x128xbf16>, vector<64x128xf32> -> vector<64x128xf32>
    %15 = arith.addf %13, %14 : vector<64x128xf32>
    %16 = arith.addf %12, %15 : vector<64x128xf32>
    %c0_19 = arith.constant 0 : index
    %c0_20 = arith.constant 0 : index
    %17 = vector.load %arg7[%c0_19, %c0_20] : memref<64x128xf32, #tpu.memory_space<vmem>>, vector<64x128xf32>
    tpu.vector_store %arg7[%c0_19, %c0_20], %16 {strides = array<i32>} : memref<64x128xf32, #tpu.memory_space<vmem>>, vector<64x128xf32>,
    %c1_21 = arith.constant 1 : index
    %c0_22 = arith.constant 0 : index
    %c0_23 = arith.constant 0 : index
    %18 = vector.load %arg4[%c1_21, %c0_22, %c0_23] : memref<3x384x128xbf16, #tpu.memory_space<vmem>>, vector<1x256x128xbf16>
    %19 = vector.shape_cast %18 : vector<1x256x128xbf16> to vector<256x128xbf16>
    %c1_24 = arith.constant 1 : index
    %c256_25 = arith.constant 256 : index
    %c0_26 = arith.constant 0 : index
    %20 = vector.load %arg4[%c1_24, %c256_25, %c0_26] : memref<3x384x128xbf16, #tpu.memory_space<vmem>>, vector<1x128x128xbf16>
    %21 = vector.shape_cast %20 : vector<1x128x128xbf16> to vector<128x128xbf16>
    %c0_27 = arith.constant 0 : index
    %c0_28 = arith.constant 0 : index
    %c1_29 = arith.constant 1 : index
    %c0_30 = arith.constant 0 : index
    %c0_31 = arith.constant 0 : index
    %22 = vector.load %arg2[%c0_27, %c0_28, %c1_29, %c0_30, %c0_31] : memref<1x8x2x9x256xbf16, #tpu.memory_space<vmem>>, vector<1x8x1x8x256xbf16>
    %23 = vector.shape_cast %22 : vector<1x8x1x8x256xbf16> to vector<8x8x256xbf16>
    %24 = vector.shape_cast %23 : vector<8x8x256xbf16> to vector<64x256xbf16>
    %c0_32 = arith.constant 0 : index
    %c0_33 = arith.constant 0 : index
    %c1_34 = arith.constant 1 : index
    %c1_35 = arith.constant 1 : index
    %c0_36 = arith.constant 0 : index
    %25 = vector.load %arg2[%c0_32, %c0_33, %c1_34, %c1_35, %c0_36] : memref<1x8x2x9x256xbf16, #tpu.memory_space<vmem>>, vector<1x8x1x8x128xbf16>
    %26 = vector.shape_cast %25 : vector<1x8x1x8x128xbf16> to vector<8x8x128xbf16>
    %27 = vector.shape_cast %26 : vector<8x8x128xbf16> to vector<64x128xbf16>
    %c0_37 = arith.constant 0 : index
    %c0_38 = arith.constant 0 : index
    %28 = vector.load %arg7[%c0_37, %c0_38] : memref<64x128xf32, #tpu.memory_space<vmem>>, vector<64x128xf32>
    %cst_39 = arith.constant dense<0.000000e+00> : vector<64x128xf32>
    %29 = tpu.matmul %24, %19, %cst_39 {dimension_numbers = #tpu.dot_dimension_numbers<[1], [0], [0], [1], [0, 0, 1, 1], [], []>} : vector<64x256xbf16>, vector<256x128xbf16>, vector<64x128xf32> -> vector<64x128xf32>
    %cst_40 = arith.constant dense<0.000000e+00> : vector<64x128xf32>
    %30 = tpu.matmul %27, %21, %cst_40 {dimension_numbers = #tpu.dot_dimension_numbers<[1], [0], [0], [1], [0, 0, 1, 1], [], []>} : vector<64x128xbf16>, vector<128x128xbf16>, vector<64x128xf32> -> vector<64x128xf32>
    %31 = arith.addf %29, %30 : vector<64x128xf32>
    %32 = arith.addf %28, %31 : vector<64x128xf32>
    %c0_41 = arith.constant 0 : index
    %c0_42 = arith.constant 0 : index
    %33 = vector.load %arg7[%c0_41, %c0_42] : memref<64x128xf32, #tpu.memory_space<vmem>>, vector<64x128xf32>
    tpu.vector_store %arg7[%c0_41, %c0_42], %32 {strides = array<i32>} : memref<64x128xf32, #tpu.memory_space<vmem>>, vector<64x128xf32>,
    %c2 = arith.constant 2 : index
    %c0_43 = arith.constant 0 : index
    %c0_44 = arith.constant 0 : index
    %34 = vector.load %arg4[%c2, %c0_43, %c0_44] : memref<3x384x128xbf16, #tpu.memory_space<vmem>>, vector<1x256x128xbf16>
    %35 = vector.shape_cast %34 : vector<1x256x128xbf16> to vector<256x128xbf16>
    %c2_45 = arith.constant 2 : index
    %c256_46 = arith.constant 256 : index
    %c0_47 = arith.constant 0 : index
    %36 = vector.load %arg4[%c2_45, %c256_46, %c0_47] : memref<3x384x128xbf16, #tpu.memory_space<vmem>>, vector<1x128x128xbf16>
    %37 = vector.shape_cast %36 : vector<1x128x128xbf16> to vector<128x128xbf16>
    %c0_48 = arith.constant 0 : index
    %c1_49 = arith.constant 1 : index
    %c0_50 = arith.constant 0 : index
    %c0_51 = arith.constant 0 : index
    %c0_52 = arith.constant 0 : index
    %38 = vector.load %arg2[%c0_48, %c1_49, %c0_50, %c0_51, %c0_52] : memref<1x8x2x9x256xbf16, #tpu.memory_space<vmem>>, vector<1x7x1x8x256xbf16>
    %39 = vector.shape_cast %38 : vector<1x7x1x8x256xbf16> to vector<7x8x256xbf16>
    %40 = vector.shape_cast %39 : vector<7x8x256xbf16> to vector<56x256xbf16>
    %c0_53 = arith.constant 0 : index
    %c1_54 = arith.constant 1 : index
    %c0_55 = arith.constant 0 : index
    %c1_56 = arith.constant 1 : index
    %c0_57 = arith.constant 0 : index
    %41 = vector.load %arg2[%c0_53, %c1_54, %c0_55, %c1_56, %c0_57] : memref<1x8x2x9x256xbf16, #tpu.memory_space<vmem>>, vector<1x7x1x8x128xbf16>
    %42 = vector.shape_cast %41 : vector<1x7x1x8x128xbf16> to vector<7x8x128xbf16>
    %43 = vector.shape_cast %42 : vector<7x8x128xbf16> to vector<56x128xbf16>
    %c0_58 = arith.constant 0 : index
    %c0_59 = arith.constant 0 : index
    %44 = vector.load %arg7[%c0_58, %c0_59] : memref<64x128xf32, #tpu.memory_space<vmem>>, vector<56x128xf32>
    %cst_60 = arith.constant dense<0.000000e+00> : vector<56x128xf32>
    %45 = tpu.matmul %40, %35, %cst_60 {dimension_numbers = #tpu.dot_dimension_numbers<[1], [0], [0], [1], [0, 0, 1, 1], [], []>} : vector<56x256xbf16>, vector<256x128xbf16>, vector<56x128xf32> -> vector<56x128xf32>
    %cst_61 = arith.constant dense<0.000000e+00> : vector<56x128xf32>
    %46 = tpu.matmul %43, %37, %cst_61 {dimension_numbers = #tpu.dot_dimension_numbers<[1], [0], [0], [1], [0, 0, 1, 1], [], []>} : vector<56x128xbf16>, vector<128x128xbf16>, vector<56x128xf32> -> vector<56x128xf32>
    %47 = arith.addf %45, %46 : vector<56x128xf32>
    %48 = arith.addf %44, %47 : vector<56x128xf32>
    %c0_62 = arith.constant 0 : index
    %c0_63 = arith.constant 0 : index
    %49 = vector.load %arg7[%c0_62, %c0_63] : memref<64x128xf32, #tpu.memory_space<vmem>>, vector<56x128xf32>
    tpu.vector_store %arg7[%c0_62, %c0_63], %48 {strides = array<i32>} : memref<64x128xf32, #tpu.memory_space<vmem>>, vector<56x128xf32>,
    %c0_64 = arith.constant 0 : index
    %c0_65 = arith.constant 0 : index
    %c0_66 = arith.constant 0 : index
    %c0_67 = arith.constant 0 : index
    %c0_68 = arith.constant 0 : index
    %50 = vector.load %arg3[%c0_64, %c0_65, %c0_66, %c0_67, %c0_68] : memref<1x1x1x9x256xbf16, #tpu.memory_space<vmem>>, vector<1x1x1x8x256xbf16>
    %51 = vector.shape_cast %50 : vector<1x1x1x8x256xbf16> to vector<8x256xbf16>
    %c0_69 = arith.constant 0 : index
    %c0_70 = arith.constant 0 : index
    %c0_71 = arith.constant 0 : index
    %c1_72 = arith.constant 1 : index
    %c0_73 = arith.constant 0 : index
    %52 = vector.load %arg3[%c0_69, %c0_70, %c0_71, %c1_72, %c0_73] : memref<1x1x1x9x256xbf16, #tpu.memory_space<vmem>>, vector<1x1x1x8x128xbf16>
    %53 = vector.shape_cast %52 : vector<1x1x1x8x128xbf16> to vector<8x128xbf16>
    %c56 = arith.constant 56 : index
    %c0_74 = arith.constant 0 : index
    %54 = vector.load %arg7[%c56, %c0_74] : memref<64x128xf32, #tpu.memory_space<vmem>>, vector<8x128xf32>
    %cst_75 = arith.constant dense<0.000000e+00> : vector<8x128xf32>
    %55 = tpu.matmul %51, %35, %cst_75 {dimension_numbers = #tpu.dot_dimension_numbers<[1], [0], [0], [1], [0, 0, 1, 1], [], []>} : vector<8x256xbf16>, vector<256x128xbf16>, vector<8x128xf32> -> vector<8x128xf32>
    %cst_76 = arith.constant dense<0.000000e+00> : vector<8x128xf32>
    %56 = tpu.matmul %53, %37, %cst_76 {dimension_numbers = #tpu.dot_dimension_numbers<[1], [0], [0], [1], [0, 0, 1, 1], [], []>} : vector<8x128xbf16>, vector<128x128xbf16>, vector<8x128xf32> -> vector<8x128xf32>
    %57 = arith.addf %55, %56 : vector<8x128xf32>
    %58 = arith.addf %54, %57 : vector<8x128xf32>
    %c56_77 = arith.constant 56 : index
    %c0_78 = arith.constant 0 : index
    %59 = vector.load %arg7[%c56_77, %c0_78] : memref<64x128xf32, #tpu.memory_space<vmem>>, vector<8x128xf32>
    tpu.vector_store %arg7[%c56_77, %c0_78], %58 {strides = array<i32>} : memref<64x128xf32, #tpu.memory_space<vmem>>, vector<8x128xf32>,
    %c0_79 = arith.constant 0 : index
    %c0_80 = arith.constant 0 : index
    %60 = vector.load %arg7[%c0_79, %c0_80] : memref<64x128xf32, #tpu.memory_space<vmem>>, vector<64x128xf32>
    %c0_81 = arith.constant 0 : index
    %c0_82 = arith.constant 0 : index
    %61 = vector.load %arg5[%c0_81, %c0_82] : memref<1x128xf32, #tpu.memory_space<vmem>>, vector<1x128xf32>
    %62 = vector.broadcast %61 : vector<1x128xf32> to vector<64x128xf32>
    %63 = arith.addf %60, %62 : vector<64x128xf32>
    %c0_83 = arith.constant 0 : index
    %c0_84 = arith.constant 0 : index
    %c0_85 = arith.constant 0 : index
    %64 = vector.load %arg6[%c0_83, %c0_84, %c0_85] : memref<1x64x128xf32, #tpu.memory_space<vmem>>, vector<1x64x128xf32>
    %65 = vector.shape_cast %64 : vector<1x64x128xf32> to vector<64x128xf32>
    %66 = vector.shape_cast %63 : vector<64x128xf32> to vector<1x64x128xf32>
    tpu.vector_store %arg6[%c0_83, %c0_84, %c0_85], %66 {strides = array<i32>} : memref<1x64x128xf32, #tpu.memory_space<vmem>>, vector<1x64x128xf32>,
    return
  }
  func.func @transform_0(%arg0: i32, %arg1: i32) -> (i32, i32, i32, i32, i32) {
    %c0_i32 = arith.constant 0 : i32
    %c0_i32_0 = arith.constant 0 : i32
    %c0_i32_1 = arith.constant 0 : i32
    %c0_i32_2 = arith.constant 0 : i32
    return %arg0, %arg1, %c0_i32, %c0_i32_0, %c0_i32_1 : i32, i32, i32, i32, i32
  }
  func.func @transform_1(%arg0: i32, %arg1: i32) -> (i32, i32, i32, i32, i32) {
    %c1_i32 = arith.constant 1 : i32
    %0 = arith.addi %arg1, %c1_i32 : i32
    %c8_i32 = arith.constant 8 : i32
    %1 = arith.muli %0, %c8_i32 : i32
    %c0_i32 = arith.constant 0 : i32
    %c0_i32_0 = arith.constant 0 : i32
    %c0_i32_1 = arith.constant 0 : i32
    %c0_i32_2 = arith.constant 0 : i32
    return %arg0, %1, %c0_i32, %c0_i32_0, %c0_i32_1 : i32, i32, i32, i32, i32
  }
  func.func @transform_2(%arg0: i32, %arg1: i32) -> (i32, i32, i32) {
    %c0_i32 = arith.constant 0 : i32
    %c0_i32_0 = arith.constant 0 : i32
    %c0_i32_1 = arith.constant 0 : i32
    %c0_i32_2 = arith.constant 0 : i32
    return %c0_i32, %c0_i32_0, %c0_i32_1 : i32, i32, i32
  }
  func.func @transform_3(%arg0: i32, %arg1: i32) -> (i32, i32) {
    %c0_i32 = arith.constant 0 : i32
    %c0_i32_0 = arith.constant 0 : i32
    %c0_i32_1 = arith.constant 0 : i32
    return %c0_i32, %c0_i32_0 : i32, i32
  }
  func.func @transform_4(%arg0: i32, %arg1: i32) -> (i32, i32, i32) {
    %c0_i32 = arith.constant 0 : i32
    %c0_i32_0 = arith.constant 0 : i32
    return %arg0, %arg1, %c0_i32 : i32, i32, i32
  }
}

</mosaic_0001>

<llo_original>
// kernel: downsample_conv.1
$region0: #{downsample_conv.1}
  #allocation0 [shape = 'u32[]', space=smem, size = 0x4, offset = 0x4, fixed_abs, tag = 'smem constant byte address 0x4 - core index']
  #allocation1 [shape = 'u32[144,128]{1,0:T(1,128)}', space=vmem, size = 0x12000, scoped, tag = 'internal scratch']
  #allocation2 [shape = 'f32[64,128]{1,0:T(8,128)}', space=vmem, size = 0x8000, scoped, tag = 'scratch operand']
  %s0 = inlined_call_operand.vmem [shape: bf16[2,9,2,9,256], index: 0, kind: input, shape index: {}, may-alias: {0,1}]
  %s1 = inlined_call_operand.vmem [shape: bf16[2,9,2,9,256], index: 1, kind: input, shape index: {}, may-alias: {0,1}]
  %s2 = inlined_call_operand.vmem [shape: bf16[3,384,128], index: 2, kind: input, shape index: {}]
  %s3 = inlined_call_operand.vmem [shape: f32[1,128], index: 3, kind: input, shape index: {}]
  %s4 = inlined_call_operand.hbm [shape: f32[2,64,128], index: 4, kind: output, shape index: {}]
  %s5 = sld [smem:[#allocation0]]
  $region49: #{downsample_conv.1} parent=0
    _
  %s7 = ssub.s32 1, %s5
  %s8 = scalar_select 0, %s7, %s5
  $region1: #{downsample_conv.1} parent=0
    #allocation3 [shape = 'u8[65536]{0}', space=vmem, size = 0x10000, scoped, tag = 'output window, operand 0']
    #allocation4 [shape = 's32[2]{0}', space=sflag, size = 0x8, scoped, tag = 'scoped memory for downsample_conv.1']
    %9 = vsyncpa [#allocation4], 0
    %s10 = scalar_lea.sflag [#allocation4], 1
    %11 = vsyncpa %s10, 0
    loop: start=0, step=1, limit=4
    $region2: #{downsample_conv.1} parent=1 // loop_pre_header
      _
    $region3: #{downsample_conv.1} parent=1 // loop_header
      %s13 = sphi 0, %s17
      %p14 = scmp.ge.s32.totalorder %s13, 4
      %s20 = sphi 0, %s32
      %s21 = sphi 0, %s28
      %s22 = sphi 0, %s20
      %s23 = sphi 0, %s21
      %s24 = sphi 0, %s22
      %s25 = sphi 0, %s23
      %s37 = sphi 0, %s39
      %s40 = sphi 0, %s37
      %s41 = sphi 0, %s40
      %s57 = sphi 0, %s41
      %s69 = sphi 0, %s71
      %s72 = sphi 0, %s69
      %s73 = sphi 0, %s72
      %s89 = sphi 0, %s73
      %s93 = sphi 0, %s93
      %s95 = sphi 0, %s93
      %s96 = sphi 0, %s95
      %s110 = sphi 0, %s96
      %s114 = sphi 0, %s114
      %s116 = sphi 0, %s114
      %s117 = sphi 0, %s116
      %s131 = sphi 0, %s117
      %s139 = sphi 0, %s141
      %s142 = sphi 0, %s139
      %s143 = sphi 0, %s142
      %s159 = sphi 0, %s143
    $region4: #{downsample_conv.1} parent=1 // loop_header_branch
      %16 = sbr.rel (%p14) target = $region8
    $region5: #{downsample_conv.1} parent=1 // loop_body
      %s18 = ssub.s32 %s13, 1
      %s19 = ssub.s32 %s13, 2
      %s26 = sadd.s32 1, %s21
      %p27 = scmp.ge.s32.totalorder %s26, 1
      %s28 = scalar_select %p27, 0, %s26
      %s29 = sadd.s32 1, %s20
      %s30 = scalar_select %p27, %s29, %s20
      %p31 = scmp.ge.s32.totalorder %s30, 2
      %s32 = scalar_select %p31, 0, %s30
      %s33 = ssub.s32 %s20, %s32
      %s34 = ssub.s32 %s21, %s28
      %s35 = sor.u32 %s33, %s34
      %p36 = scmp.eq.s32.totalorder %s35, 0
      %s38 = sadd.s32 %s37, 1
      %s39 = scalar_select %p36, %s37, %s38
      %p42 = pneg %p36
      %p43 = scmp.eq.s32.totalorder %s13, 1
      %p44 = por %p42, %p43
      %p45 = scmp.ne.s32.totalorder %s37, %s40
      %p46 = scmp.eq.s32.totalorder %s13, 0
      %p47 = por %p45, %p46
      %p48 = scmp.ne.s32.totalorder %s37, %s40
      %p49 = scmp.eq.s32.totalorder %s18, 1
      %p50 = por %p48, %p49
      %p51 = scmp.ne.s32.totalorder %s40, %s41
      %p52 = scmp.eq.s32.totalorder %s18, 0
      %p53 = por %p51, %p52
      %p54 = scmp.ne.s32.totalorder %s40, %s41
      %p55 = scmp.eq.s32.totalorder %s19, 1
      %p56 = por %p54, %p55
      %p58 = scmp.ne.s32.totalorder %s41, %s57
      %p59 = scmp.eq.s32.totalorder %s19, 0
      %p60 = por %p58, %p59
      %s61 = sadd.s32 %s21, 1
      %s62 = smul.u32 %s61, 8
      %s63 = sadd.s32 %s28, 1
      %s64 = smul.u32 %s63, 8
      %s65 = ssub.s32 %s20, %s32
      %s66 = ssub.s32 %s62, %s64
      %s67 = sor.u32 %s65, %s66
      %p68 = scmp.eq.s32.totalorder %s67, 0
      %s70 = sadd.s32 %s69, 1
      %s71 = scalar_select %p68, %s69, %s70
      %p74 = pneg %p68
      %p75 = scmp.eq.s32.totalorder %s13, 1
      %p76 = por %p74, %p75
      %p77 = scmp.ne.s32.totalorder %s69, %s72
      %p78 = scmp.eq.s32.totalorder %s13, 0
      %p79 = por %p77, %p78
      %p80 = scmp.ne.s32.totalorder %s69, %s72
      %p81 = scmp.eq.s32.totalorder %s18, 1
      %p82 = por %p80, %p81
      %p83 = scmp.ne.s32.totalorder %s72, %s73
      %p84 = scmp.eq.s32.totalorder %s18, 0
      %p85 = por %p83, %p84
      %p86 = scmp.ne.s32.totalorder %s72, %s73
      %p87 = scmp.eq.s32.totalorder %s19, 1
      %p88 = por %p86, %p87
      %p90 = scmp.ne.s32.totalorder %s73, %s89
      %p91 = scmp.eq.s32.totalorder %s19, 0
      %p92 = por %p90, %p91
      %s94 = sadd.s32 %s93, 1
      %p97 = scmp.eq.s32.totalorder %s13, 1
      %p98 = scmp.ne.s32.totalorder %s93, %s95
      %p99 = scmp.eq.s32.totalorder %s13, 0
      %p100 = por %p98, %p99
      %p101 = scmp.ne.s32.totalorder %s93, %s95
      %p102 = scmp.eq.s32.totalorder %s18, 1
      %p103 = por %p101, %p102
      %p104 = scmp.ne.s32.totalorder %s95, %s96
      %p105 = scmp.eq.s32.totalorder %s18, 0
      %p106 = por %p104, %p105
      %p107 = scmp.ne.s32.totalorder %s95, %s96
      %p108 = scmp.eq.s32.totalorder %s19, 1
      %p109 = por %p107, %p108
      %p111 = scmp.ne.s32.totalorder %s96, %s110
      %p112 = scmp.eq.s32.totalorder %s19, 0
      %p113 = por %p111, %p112
      %s115 = sadd.s32 %s114, 1
      %p118 = scmp.eq.s32.totalorder %s13, 1
      %p119 = scmp.ne.s32.totalorder %s114, %s116
      %p120 = scmp.eq.s32.totalorder %s13, 0
      %p121 = por %p119, %p120
      %p122 = scmp.ne.s32.totalorder %s114, %s116
      %p123 = scmp.eq.s32.totalorder %s18, 1
      %p124 = por %p122, %p123
      %p125 = scmp.ne.s32.totalorder %s116, %s117
      %p126 = scmp.eq.s32.totalorder %s18, 0
      %p127 = por %p125, %p126
      %p128 = scmp.ne.s32.totalorder %s116, %s117
      %p129 = scmp.eq.s32.totalorder %s19, 1
      %p130 = por %p128, %p129
      %p132 = scmp.ne.s32.totalorder %s117, %s131
      %p133 = scmp.eq.s32.totalorder %s19, 0
      %p134 = por %p132, %p133
      %s135 = ssub.s32 %s20, %s32
      %s136 = ssub.s32 %s21, %s28
      %s137 = sor.u32 %s135, %s136
      %p138 = scmp.eq.s32.totalorder %s137, 0
      %s140 = sadd.s32 %s139, 1
      %s141 = scalar_select %p138, %s139, %s140
      %p144 = pneg %p138
      %p145 = scmp.eq.s32.totalorder %s13, 1
      %p146 = por %p144, %p145
      %p147 = scmp.ne.s32.totalorder %s139, %s142
      %p148 = scmp.eq.s32.totalorder %s13, 0
      %p149 = por %p147, %p148
      %p150 = scmp.ne.s32.totalorder %s139, %s142
      %p151 = scmp.eq.s32.totalorder %s18, 1
      %p152 = por %p150, %p151
      %p153 = scmp.ne.s32.totalorder %s142, %s143
      %p154 = scmp.eq.s32.totalorder %s18, 0
      %p155 = por %p153, %p154
      %p156 = scmp.ne.s32.totalorder %s142, %s143
      %p157 = scmp.eq.s32.totalorder %s19, 1
      %p158 = por %p156, %p157
      %p160 = scmp.ne.s32.totalorder %s143, %s159
      %p161 = scmp.eq.s32.totalorder %s19, 0
      %p162 = por %p160, %p161
      %p163 = scmp.le.s32.totalorder 1, %s13
      %p164 = scmp.lt.s32.totalorder %s13, 3
      %p165 = pnand %p163, %p164
      %p166 = pneg %p165
      // Predicated region
      $region9: #{downsample_conv.1} parent=5 // pred_check
        _
      $region10: #{downsample_conv.1} parent=5 // pred_check_branch
        %168 = sbr.rel (%p165) target = $region12
      $region11: #{downsample_conv.1} parent=5 // pred_region
        %s169 = ssub.s32 %s13, 1
        // Predicated region
        $region13: #{downsample_conv.1} parent=11 // pred_check
          %p170 = pneg %p106
        $region14: #{downsample_conv.1} parent=11 // pred_check_branch
          %172 = sbr.rel (%p170) target = $region16
        $region15: #{downsample_conv.1} parent=11 // pred_region
          _
        $region16: #{downsample_conv.1} parent=11 // pred_fallthru
          _
        // Predicated region
        $region17: #{downsample_conv.1} parent=11 // pred_check
          %p173 = pneg %p127
        $region18: #{downsample_conv.1} parent=11 // pred_check_branch
          %175 = sbr.rel (%p173) target = $region20
        $region19: #{downsample_conv.1} parent=11 // pred_region
          _
        $region20: #{downsample_conv.1} parent=11 // pred_fallthru
          _
      $region12: #{downsample_conv.1} parent=5 // pred_fallthru
        _
      %p176 = scmp.lt.s32.totalorder %s13, 2
      // Predicated region
      $region21: #{downsample_conv.1} parent=5 // pred_check
        %p177 = pneg %p176
      $region22: #{downsample_conv.1} parent=5 // pred_check_branch
        %179 = sbr.rel (%p177) target = $region24
      $region23: #{downsample_conv.1} parent=5 // pred_region
        // Predicated region
        $region25: #{downsample_conv.1} parent=23 // pred_check
          %p180 = pneg %p47
        $region26: #{downsample_conv.1} parent=23 // pred_check_branch
          %182 = sbr.rel (%p180) target = $region28
        $region27: #{downsample_conv.1} parent=23 // pred_region
          %s183 = smul.u32 8, %s21
          %s184 = ssub.s32 9, %s183
          %p185 = scmp.lt.s32.totalorder %s184, 8
          %s186 = scalar_select %p185, %s184, 8
          %s187 = smul.u32 64, %s186
          %s188 = smul.u32 %s187, 2
          %s189 = smul.u32 %s188, 2
          %s190 = smul.u32 %s189, 2
          %p191 = scmp.lt.s32.totalorder %s20, 1
          %s192 = scalar_select %p191, %s20, 1
          %p193 = scmp.lt.s32.totalorder %s183, 8
          %s194 = scalar_select %p193, %s183, 8
          %s195 = smul.addr %s194, 8
          %s196 = smul.addr %s192, 72
          %s197 = sadd.s32 %s195, %s196
          %s198 = smul.addr %s197, 4
          %s199 = scalar_lea.vmem %s0, %s198
          %s200 = smul.u32 8, %s21
          %s201 = ssub.s32 9, %s200
          %p202 = scmp.lt.s32.totalorder %s201, 8
          %s203 = scalar_select %p202, %s201, 8
          %s204 = smul.u32 64, %s203
          %s205 = smul.u32 %s204, 2
          %s206 = smul.u32 %s205, 2
          %s207 = smul.u32 %s206, 2
        $region28: #{downsample_conv.1} parent=23 // pred_fallthru
          _
        // Predicated region
        $region29: #{downsample_conv.1} parent=23 // pred_check
          %p208 = pneg %p79
        $region30: #{downsample_conv.1} parent=23 // pred_check_branch
          %210 = sbr.rel (%p208) target = $region32
        $region31: #{downsample_conv.1} parent=23 // pred_region
          %s211 = sadd.s32 %s21, 1
          %s212 = smul.u32 %s211, 8
          %p213 = scmp.lt.s32.totalorder %s20, 1
          %s214 = scalar_select %p213, %s20, 1
          %p215 = scmp.lt.s32.totalorder %s212, 8
          %s216 = scalar_select %p215, %s212, 8
          %s217 = smul.addr %s216, 8
          %s218 = smul.addr %s214, 72
          %s219 = sadd.s32 %s217, %s218
          %s220 = smul.addr %s219, 4
          %s221 = scalar_lea.vmem %s1, %s220
          %s222 = sadd.s32 %s21, 1
          %s223 = smul.u32 %s222, 8
        $region32: #{downsample_conv.1} parent=23 // pred_fallthru
          _
      $region24: #{downsample_conv.1} parent=5 // pred_fallthru
        _
      %p224 = scmp.le.s32.totalorder 1, %s13
      %p225 = scmp.lt.s32.totalorder %s13, 3
      %p226 = pnand %p224, %p225
      %p227 = pneg %p226
      // Predicated region
      $region33: #{downsample_conv.1} parent=5 // pred_check
        _
      $region34: #{downsample_conv.1} parent=5 // pred_check_branch
        %229 = sbr.rel (%p226) target = $region36
      $region35: #{downsample_conv.1} parent=5 // pred_region
        %s230 = ssub.s32 %s13, 1
        %s231 = smul.u32 8, %s23
        %s232 = ssub.s32 9, %s231
        %p233 = scmp.lt.s32.totalorder %s232, 8
        %s234 = scalar_select %p233, %s232, 8
        %s235 = smul.u32 64, %s234
        %s236 = smul.u32 %s235, 2
        %s237 = smul.u32 %s236, 2
        %s238 = smul.u32 %s237, 2
        %p239 = scmp.lt.s32.totalorder %s22, 1
        %s240 = scalar_select %p239, %s22, 1
        %p241 = scmp.lt.s32.totalorder %s231, 8
        %s242 = scalar_select %p241, %s231, 8
        %s243 = smul.addr %s242, 8
        %s244 = smul.addr %s240, 72
        %s245 = sadd.s32 %s243, %s244
        %s246 = smul.addr %s245, 4
        %s247 = scalar_lea.vmem %s0, %s246
        %p248 = pneg %p53
        %p249 = pneg %p50
        %s250 = sadd.s32 %s23, 1
        %s251 = smul.u32 %s250, 8
        %p252 = scmp.lt.s32.totalorder %s22, 1
        %s253 = scalar_select %p252, %s22, 1
        %p254 = scmp.lt.s32.totalorder %s251, 8
        %s255 = scalar_select %p254, %s251, 8
        %s256 = smul.addr %s255, 8
        %s257 = smul.addr %s253, 72
        %s258 = sadd.s32 %s256, %s257
        %s259 = smul.addr %s258, 4
        %s260 = scalar_lea.vmem %s1, %s259
        %p261 = pneg %p85
        %p262 = pneg %p82
        %p263 = pneg %p106
        %p264 = pneg %p103
        %p265 = pneg %p127
        %p266 = pneg %p124
        %p267 = pneg %p155
        %p268 = pneg %p152
        %s269 = sand.u32 %s142, 1
        %s270 = scalar_lea.sflag [#allocation4], %s269
        %s271 = sand.u32 %s142, 1
        %s272 = smul.addr %s271, 64
        %s273 = scalar_lea.vmem [#allocation3], %s272
        %s274 = smul.u32 8, %s23
        %s275 = ssub.s32 9, %s274
        %p276 = scmp.lt.s32.totalorder %s275, 8
        %s277 = scalar_select %p276, %s275, 8
        %s278 = smul.u32 64, %s277
        %s279 = smul.u32 %s278, 2
        %s280 = smul.u32 %s279, 2
        %s281 = smul.u32 %s280, 2
        %p282 = scmp.lt.s32.totalorder %s22, 1
        %s283 = scalar_select %p282, %s22, 1
        %p284 = scmp.lt.s32.totalorder %s274, 8
        %s285 = scalar_select %p284, %s274, 8
        %s286 = smul.addr %s285, 8
        %s287 = smul.addr %s283, 72
        %s288 = sadd.s32 %s286, %s287
        %s289 = smul.addr %s288, 4
        %s290 = scalar_lea.vmem %s0, %s289
        %s291 = smul.u32 8, %s23
        %s292 = ssub.s32 9, %s291
        %p293 = scmp.lt.s32.totalorder %s292, 8
        %s294 = scalar_select %p293, %s292, 8
        %s295 = smul.u32 64, %s294
        %s296 = smul.u32 %s295, 2
        %s297 = smul.u32 %s296, 2
        %s298 = smul.u32 %s297, 2
        %s299 = sadd.s32 %s23, 1
        %s300 = smul.u32 %s299, 8
        %p301 = scmp.lt.s32.totalorder %s22, 1
        %s302 = scalar_select %p301, %s22, 1
        %p303 = scmp.lt.s32.totalorder %s300, 8
        %s304 = scalar_select %p303, %s300, 8
        %s305 = smul.addr %s304, 8
        %s306 = smul.addr %s302, 72
        %s307 = sadd.s32 %s305, %s306
        %s308 = smul.addr %s307, 4
        %s309 = scalar_lea.vmem %s1, %s308
        %s310 = sadd.s32 %s23, 1
        %s311 = smul.u32 %s310, 8
        %s312 = smul.u32 8, %s23
        %314 = vst [vmem:[#allocation2] sm:$0xff] 0.0
        %315 = vst [vmem:[#allocation2 + $0x8] sm:$0xff] 0.0
        %316 = vst [vmem:[#allocation2 + $0x10] sm:$0xff] 0.0
        %317 = vst [vmem:[#allocation2 + $0x18] sm:$0xff] 0.0
        %318 = vst [vmem:[#allocation2 + $0x20] sm:$0xff] 0.0
        %319 = vst [vmem:[#allocation2 + $0x28] sm:$0xff] 0.0
        %320 = vst [vmem:[#allocation2 + $0x30] sm:$0xff] 0.0
        %321 = vst [vmem:[#allocation2 + $0x38] sm:$0xff] 0.0
        %v322 = vld [vmem:[%s2] sm:$0xf]
        %v323 = vld [vmem:[%s2 + $0x4] sm:$0xf]
        %v324 = vld [vmem:[%s2 + $0x8] sm:$0xf]
        %v325 = vld [vmem:[%s2 + $0xc] sm:$0xf]
        %v326 = vld [vmem:[%s2 + $0x10] sm:$0xf]
        %v327 = vld [vmem:[%s2 + $0x14] sm:$0xf]
        %v328 = vld [vmem:[%s2 + $0x18] sm:$0xf]
        %v329 = vld [vmem:[%s2 + $0x1c] sm:$0xf]
        %v330 = vld [vmem:[%s2 + $0x20] sm:$0xf]
        %v331 = vld [vmem:[%s2 + $0x24] sm:$0xf]
        %v332 = vld [vmem:[%s2 + $0x28] sm:$0xf]
        %v333 = vld [vmem:[%s2 + $0x2c] sm:$0xf]
        %v334 = vld [vmem:[%s2 + $0x30] sm:$0xf]
        %v335 = vld [vmem:[%s2 + $0x34] sm:$0xf]
        %v336 = vld [vmem:[%s2 + $0x38] sm:$0xf]
        %v337 = vld [vmem:[%s2 + $0x3c] sm:$0xf]
        %v338 = vld [vmem:[%s2 + $0x40] sm:$0xf]
        %v339 = vld [vmem:[%s2 + $0x44] sm:$0xf]
        %v340 = vld [vmem:[%s2 + $0x48] sm:$0xf]
        %v341 = vld [vmem:[%s2 + $0x4c] sm:$0xf]
        %v342 = vld [vmem:[%s2 + $0x50] sm:$0xf]
        %v343 = vld [vmem:[%s2 + $0x54] sm:$0xf]
        %v344 = vld [vmem:[%s2 + $0x58] sm:$0xf]
        %v345 = vld [vmem:[%s2 + $0x5c] sm:$0xf]
        %v346 = vld [vmem:[%s2 + $0x60] sm:$0xf]
        %v347 = vld [vmem:[%s2 + $0x64] sm:$0xf]
        %v348 = vld [vmem:[%s2 + $0x68] sm:$0xf]
        %v349 = vld [vmem:[%s2 + $0x6c] sm:$0xf]
        %v350 = vld [vmem:[%s2 + $0x70] sm:$0xf]
        %v351 = vld [vmem:[%s2 + $0x74] sm:$0xf]
        %v352 = vld [vmem:[%s2 + $0x78] sm:$0xf]
        %v353 = vld [vmem:[%s2 + $0x7c] sm:$0xf]
        %v354 = vld [vmem:[%s2 + $0x80] sm:$0xf]
        %v355 = vld [vmem:[%s2 + $0x84] sm:$0xf]
        %v356 = vld [vmem:[%s2 + $0x88] sm:$0xf]
        %v357 = vld [vmem:[%s2 + $0x8c] sm:$0xf]
        %v358 = vld [vmem:[%s2 + $0x90] sm:$0xf]
        %v359 = vld [vmem:[%s2 + $0x94] sm:$0xf]
        %v360 = vld [vmem:[%s2 + $0x98] sm:$0xf]
        %v361 = vld [vmem:[%s2 + $0x9c] sm:$0xf]
        %v362 = vld [vmem:[%s2 + $0xa0] sm:$0xf]
        %v363 = vld [vmem:[%s2 + $0xa4] sm:$0xf]
        %v364 = vld [vmem:[%s2 + $0xa8] sm:$0xf]
        %v365 = vld [vmem:[%s2 + $0xac] sm:$0xf]
        %v366 = vld [vmem:[%s2 + $0xb0] sm:$0xf]
        %v367 = vld [vmem:[%s2 + $0xb4] sm:$0xf]
        %v368 = vld [vmem:[%s2 + $0xb8] sm:$0xf]
        %v369 = vld [vmem:[%s2 + $0xbc] sm:$0xf]
        %v370 = vld [vmem:[%s290] sm:$0xff]
        %v371 = vld [vmem:[%s290 + $0x20] sm:$0xff]
        %v372 = vld [vmem:[%s290 + $0x40] sm:$0xff]
        %v373 = vld [vmem:[%s290 + $0x60] sm:$0xff]
        %v374 = vld [vmem:[%s290 + $0x80] sm:$0xff]
        %v375 = vld [vmem:[%s290 + $0xa0] sm:$0xff]
        %v376 = vld [vmem:[%s290 + $0xc0] sm:$0xff]
        %v377 = vld [vmem:[%s290 + $0xe0] sm:$0xff]
        %v378 = vld [vmem:[%s290] sm:$0xf]
        %v379 = vld [vmem:[%s290 + $0x8] sm:$0x1]
        %v380 = vld [vmem:[%s290 + $0x20] sm:$0xf]
        %v381 = vld [vmem:[%s290 + $0x28] sm:$0x1]
        %v382 = vld [vmem:[%s290 + $0x40] sm:$0xf]
        %v383 = vld [vmem:[%s290 + $0x48] sm:$0x1]
        %v384 = vld [vmem:[%s290 + $0x60] sm:$0xf]
        %v385 = vld [vmem:[%s290 + $0x68] sm:$0x1]
        %v386 = vld [vmem:[%s290 + $0x80] sm:$0xf]
        %v387 = vld [vmem:[%s290 + $0x88] sm:$0x1]
        %v388 = vld [vmem:[%s290 + $0xa0] sm:$0xf]
        %v389 = vld [vmem:[%s290 + $0xa8] sm:$0x1]
        %v390 = vld [vmem:[%s290 + $0xc0] sm:$0xf]
        %v391 = vld [vmem:[%s290 + $0xc8] sm:$0x1]
        %v392 = vld [vmem:[%s290 + $0xe0] sm:$0xf]
        %v393 = vld [vmem:[%s290 + $0xe8] sm:$0x1]
        %vm394 = vsmask.f32 3328
        %vm395 = vsmask.f32 7440
        %vm396 = vmor %vm394, %vm395
        %v398 = vshrl.u32 %v378, 16
        %v400 = vrot.slane %v398, 4
        %v401 = vshll.u32 %v378, 16
        %v403 = vrot.slane %v401, 5
        %v404 = vor.u32 %v400, %v403
        %v405 = vrot.slane %v404, 4
        %v407 = vshll.u32 %v379, 16
        %v409 = vrot.slane %v407, 5
        %v410 = vsel %vm396, %v405, %v409
        %v412 = vshrl.u32 %v380, 16
        %v414 = vrot.slane %v412, 4
        %v415 = vshll.u32 %v380, 16
        %v417 = vrot.slane %v415, 5
        %v418 = vor.u32 %v414, %v417
        %v419 = vrot.slane %v418, 4
        %v421 = vshll.u32 %v381, 16
        %v423 = vrot.slane %v421, 5
        %v424 = vsel %vm396, %v419, %v423
        %v426 = vshrl.u32 %v382, 16
        %v428 = vrot.slane %v426, 4
        %v429 = vshll.u32 %v382, 16
        %v431 = vrot.slane %v429, 5
        %v432 = vor.u32 %v428, %v431
        %v433 = vrot.slane %v432, 4
        %v435 = vshll.u32 %v383, 16
        %v437 = vrot.slane %v435, 5
        %v438 = vsel %vm396, %v433, %v437
        %v440 = vshrl.u32 %v384, 16
        %v442 = vrot.slane %v440, 4
        %v443 = vshll.u32 %v384, 16
        %v445 = vrot.slane %v443, 5
        %v446 = vor.u32 %v442, %v445
        %v447 = vrot.slane %v446, 4
        %v449 = vshll.u32 %v385, 16
        %v451 = vrot.slane %v449, 5
        %v452 = vsel %vm396, %v447, %v451
        %v454 = vshrl.u32 %v386, 16
        %v456 = vrot.slane %v454, 4
        %v457 = vshll.u32 %v386, 16
        %v459 = vrot.slane %v457, 5
        %v460 = vor.u32 %v456, %v459
        %v461 = vrot.slane %v460, 4
        %v463 = vshll.u32 %v387, 16
        %v465 = vrot.slane %v463, 5
        %v466 = vsel %vm396, %v461, %v465
        %v468 = vshrl.u32 %v388, 16
        %v470 = vrot.slane %v468, 4
        %v471 = vshll.u32 %v388, 16
        %v473 = vrot.slane %v471, 5
        %v474 = vor.u32 %v470, %v473
        %v475 = vrot.slane %v474, 4
        %v477 = vshll.u32 %v389, 16
        %v479 = vrot.slane %v477, 5
        %v480 = vsel %vm396, %v475, %v479
        %v482 = vshrl.u32 %v390, 16
        %v484 = vrot.slane %v482, 4
        %v485 = vshll.u32 %v390, 16
        %v487 = vrot.slane %v485, 5
        %v488 = vor.u32 %v484, %v487
        %v489 = vrot.slane %v488, 4
        %v491 = vshll.u32 %v391, 16
        %v493 = vrot.slane %v491, 5
        %v494 = vsel %vm396, %v489, %v493
        %v496 = vshrl.u32 %v392, 16
        %v498 = vrot.slane %v496, 4
        %v499 = vshll.u32 %v392, 16
        %v501 = vrot.slane %v499, 5
        %v502 = vor.u32 %v498, %v501
        %v503 = vrot.slane %v502, 4
        %v505 = vshll.u32 %v393, 16
        %v507 = vrot.slane %v505, 5
        %v508 = vsel %vm396, %v503, %v507
        %v509 = vld [vmem:[#allocation2] sm:$0xff]
        %v510 = vld [vmem:[#allocation2 + $0x8] sm:$0xff]
        %v511 = vld [vmem:[#allocation2 + $0x10] sm:$0xff]
        %v512 = vld [vmem:[#allocation2 + $0x18] sm:$0xff]
        %v513 = vld [vmem:[#allocation2 + $0x20] sm:$0xff]
        %v514 = vld [vmem:[#allocation2 + $0x28] sm:$0xff]
        %v515 = vld [vmem:[#allocation2 + $0x30] sm:$0xff]
        %v516 = vld [vmem:[#allocation2 + $0x38] sm:$0xff]
        %v517 = vunpack.c.l.b16 %v410
        %v518 = vunpack.c.l.b16 %v424
        %v519 = vunpack.c.l.b16 %v438
        %v520 = vunpack.c.l.b16 %v452
        %v521 = vunpack.c.l.b16 %v466
        %v522 = vunpack.c.l.b16 %v480
        %v523 = vunpack.c.l.b16 %v494
        %v524 = vunpack.c.l.b16 %v508
        %v525 = vpack.c.b16 %v518, %v517
        %v526 = vpack.c.b16 %v520, %v519
        %v527 = vpack.c.b16 %v522, %v521
        %v528 = vpack.c.b16 %v524, %v523
        %v549 = vunpack.c.l.b16 %v354
        %v550 = vunpack.c.l.b16 %v355
        %v551 = vunpack.c.l.b16 %v356
        %v552 = vunpack.c.l.b16 %v357
        %v553 = vunpack.c.l.b16 %v358
        %v554 = vunpack.c.l.b16 %v359
        %v555 = vunpack.c.l.b16 %v360
        %v556 = vunpack.c.l.b16 %v361
        %v557 = vunpack.c.l.b16 %v362
        %v558 = vunpack.c.l.b16 %v363
        %v559 = vunpack.c.l.b16 %v364
        %v560 = vunpack.c.l.b16 %v365
        %v561 = vunpack.c.l.b16 %v366
        %v562 = vunpack.c.l.b16 %v367
        %v563 = vunpack.c.l.b16 %v368
        %v564 = vunpack.c.l.b16 %v369
        %v565 = vpack.c.b16 %v550, %v549
        %v566 = vpack.c.b16 %v552, %v551
        %v567 = vpack.c.b16 %v554, %v553
        %v568 = vpack.c.b16 %v556, %v555
        %v569 = vpack.c.b16 %v558, %v557
        %v570 = vpack.c.b16 %v560, %v559
        %v571 = vpack.c.b16 %v562, %v561
        %v572 = vpack.c.b16 %v564, %v563
        %581 = vmatprep.subr.bf16.mxu0 0
        %582 = vmatpush1.bf16.msra.mxu0 %v565
        %583 = vmatprep.subr.bf16.mxu0 0
        %584 = vmatpush1.bf16.msra.mxu0 %v566
        %585 = vmatprep.subr.bf16.mxu0 0
        %586 = vmatpush1.bf16.msra.mxu0 %v567
        %587 = vmatprep.subr.bf16.mxu0 0
        %588 = vmatpush1.bf16.msra.mxu0 %v568
        %589 = vmatprep.subr.bf16.mxu0 0
        %590 = vmatpush1.bf16.msra.mxu0 %v569
        %591 = vmatprep.subr.bf16.mxu0 0
        %592 = vmatpush1.bf16.msra.mxu0 %v570
        %593 = vmatprep.subr.bf16.mxu0 0
        %594 = vmatpush1.bf16.msra.mxu0 %v571
        %595 = vmatprep.subr.bf16.mxu0 0
        %596 = vmatpush1.bf16.msra.mxu0 %v572
        %597 = vmatprep.subr.bf16.mxu0 0
        %598 = vmatpush1.bf16.msra.mxu0 0
        %599 = vmatprep.subr.bf16.mxu0 0
        %600 = vmatpush1.bf16.msra.mxu0 0
        %601 = vmatprep.subr.bf16.mxu0 0
        %602 = vmatpush1.bf16.msra.mxu0 0
        %603 = vmatprep.subr.bf16.mxu0 0
        %604 = vmatpush1.bf16.msra.mxu0 0
        %605 = vmatprep.subr.bf16.mxu0 0
        %606 = vmatpush1.bf16.msra.mxu0 0
        %607 = vmatprep.subr.bf16.mxu0 0
        %608 = vmatpush1.bf16.msra.mxu0 0
        %609 = vmatprep.subr.bf16.mxu0 0
        %610 = vmatpush1.bf16.msra.mxu0 0
        %611 = vmatprep.subr.bf16.mxu0 0
        %612 = vmatpush1.bf16.msra.mxu0 0
        %613 = vmatprep.mubr.bf16.mxu0 0
        %614 = vmatmul.mubr.bf16.gmra.mrb[0].mxu0 %v525
        %v615 = vpop.f32.mrb[0].mxu0
        %v616 = vadd.f32 0.0, %v615
        %v617 = vpop.f32.mrb[0].mxu0
        %v618 = vpop.f32.mrb[0].mxu0
        %v619 = vadd.f32 0.0, %v618
        %v620 = vpop.f32.mrb[0].mxu0
        %621 = vmatprep.mubr.bf16.mxu0 0
        %622 = vmatmul.mubr.bf16.gmra.mrb[0].mxu0 %v526
        %v623 = vpop.f32.mrb[0].mxu0
        %v624 = vadd.f32 0.0, %v623
        %v625 = vpop.f32.mrb[0].mxu0
        %v626 = vpop.f32.mrb[0].mxu0
        %v627 = vadd.f32 0.0, %v626
        %v628 = vpop.f32.mrb[0].mxu0
        %629 = vmatprep.mubr.bf16.mxu0 0
        %630 = vmatmul.mubr.bf16.gmra.mrb[0].mxu0 %v527
        %v631 = vpop.f32.mrb[0].mxu0
        %v632 = vadd.f32 0.0, %v631
        %v633 = vpop.f32.mrb[0].mxu0
        %v634 = vpop.f32.mrb[0].mxu0
        %v635 = vadd.f32 0.0, %v634
        %v636 = vpop.f32.mrb[0].mxu0
        %637 = vmatprep.mubr.bf16.mxu0 0
        %638 = vmatmul.mubr.bf16.gmra.mrb[0].mxu0 %v528
        %v639 = vpop.f32.mrb[0].mxu0
        %v640 = vadd.f32 0.0, %v639
        %v641 = vpop.f32.mrb[0].mxu0
        %v642 = vpop.f32.mrb[0].mxu0
        %v643 = vadd.f32 0.0, %v642
        %v644 = vpop.f32.mrb[0].mxu0
        %645 = vdwg.mxu0
        %v654 = vunpack.c.l.b16 %v370
        %v655 = vunpack.c.h.b16 %v370
        %v656 = vunpack.c.l.b16 %v371
        %v657 = vunpack.c.h.b16 %v371
        %v658 = vunpack.c.l.b16 %v372
        %v659 = vunpack.c.h.b16 %v372
        %v660 = vunpack.c.l.b16 %v373
        %v661 = vunpack.c.h.b16 %v373
        %v662 = vunpack.c.l.b16 %v374
        %v663 = vunpack.c.h.b16 %v374
        %v664 = vunpack.c.l.b16 %v375
        %v665 = vunpack.c.h.b16 %v375
        %v666 = vunpack.c.l.b16 %v376
        %v667 = vunpack.c.h.b16 %v376
        %v668 = vunpack.c.l.b16 %v377
        %v669 = vunpack.c.h.b16 %v377
        %v670 = vpack.c.b16 %v656, %v654
        %v671 = vpack.c.b16 %v657, %v655
        %v672 = vpack.c.b16 %v660, %v658
        %v673 = vpack.c.b16 %v661, %v659
        %v674 = vpack.c.b16 %v664, %v662
        %v675 = vpack.c.b16 %v665, %v663
        %v676 = vpack.c.b16 %v668, %v666
        %v677 = vpack.c.b16 %v669, %v667
        %v718 = vunpack.c.l.b16 %v322
        %v719 = vunpack.c.l.b16 %v323
        %v720 = vunpack.c.l.b16 %v324
        %v721 = vunpack.c.l.b16 %v325
        %v722 = vunpack.c.l.b16 %v326
        %v723 = vunpack.c.l.b16 %v327
        %v724 = vunpack.c.l.b16 %v328
        %v725 = vunpack.c.l.b16 %v329
        %v726 = vunpack.c.l.b16 %v330
        %v727 = vunpack.c.l.b16 %v331
        %v728 = vunpack.c.l.b16 %v332
        %v729 = vunpack.c.l.b16 %v333
        %v730 = vunpack.c.l.b16 %v334
        %v731 = vunpack.c.l.b16 %v335
        %v732 = vunpack.c.l.b16 %v336
        %v733 = vunpack.c.l.b16 %v337
        %v734 = vunpack.c.l.b16 %v338
        %v735 = vunpack.c.l.b16 %v339
        %v736 = vunpack.c.l.b16 %v340
        %v737 = vunpack.c.l.b16 %v341
        %v738 = vunpack.c.l.b16 %v342
        %v739 = vunpack.c.l.b16 %v343
        %v740 = vunpack.c.l.b16 %v344
        %v741 = vunpack.c.l.b16 %v345
        %v742 = vunpack.c.l.b16 %v346
        %v743 = vunpack.c.l.b16 %v347
        %v744 = vunpack.c.l.b16 %v348
        %v745 = vunpack.c.l.b16 %v349
        %v746 = vunpack.c.l.b16 %v350
        %v747 = vunpack.c.l.b16 %v351
        %v748 = vunpack.c.l.b16 %v352
        %v749 = vunpack.c.l.b16 %v353
        %v750 = vpack.c.b16 %v719, %v718
        %v751 = vpack.c.b16 %v721, %v720
        %v752 = vpack.c.b16 %v723, %v722
        %v753 = vpack.c.b16 %v725, %v724
        %v754 = vpack.c.b16 %v727, %v726
        %v755 = vpack.c.b16 %v729, %v728
        %v756 = vpack.c.b16 %v731, %v730
        %v757 = vpack.c.b16 %v733, %v732
        %v758 = vpack.c.b16 %v735, %v734
        %v759 = vpack.c.b16 %v737, %v736
        %v760 = vpack.c.b16 %v739, %v738
        %v761 = vpack.c.b16 %v741, %v740
        %v762 = vpack.c.b16 %v743, %v742
        %v763 = vpack.c.b16 %v745, %v744
        %v764 = vpack.c.b16 %v747, %v746
        %v765 = vpack.c.b16 %v749, %v748
        %782 = vmatprep.subr.bf16.mxu0 0
        %783 = vmatpush1.bf16.msra.mxu0 %v750
        %784 = vmatprep.subr.bf16.mxu0 0
        %785 = vmatpush1.bf16.msra.mxu0 %v751
        %786 = vmatprep.subr.bf16.mxu0 0
        %787 = vmatpush1.bf16.msra.mxu0 %v752
        %788 = vmatprep.subr.bf16.mxu0 0
        %789 = vmatpush1.bf16.msra.mxu0 %v753
        %790 = vmatprep.subr.bf16.mxu0 0
        %791 = vmatpush1.bf16.msra.mxu0 %v754
        %792 = vmatprep.subr.bf16.mxu0 0
        %793 = vmatpush1.bf16.msra.mxu0 %v755
        %794 = vmatprep.subr.bf16.mxu0 0
        %795 = vmatpush1.bf16.msra.mxu0 %v756
        %796 = vmatprep.subr.bf16.mxu0 0
        %797 = vmatpush1.bf16.msra.mxu0 %v757
        %798 = vmatprep.subr.bf16.mxu0 0
        %799 = vmatpush1.bf16.msra.mxu0 %v758
        %800 = vmatprep.subr.bf16.mxu0 0
        %801 = vmatpush1.bf16.msra.mxu0 %v759
        %802 = vmatprep.subr.bf16.mxu0 0
        %803 = vmatpush1.bf16.msra.mxu0 %v760
        %804 = vmatprep.subr.bf16.mxu0 0
        %805 = vmatpush1.bf16.msra.mxu0 %v761
        %806 = vmatprep.subr.bf16.mxu0 0
        %807 = vmatpush1.bf16.msra.mxu0 %v762
        %808 = vmatprep.subr.bf16.mxu0 0
        %809 = vmatpush1.bf16.msra.mxu0 %v763
        %810 = vmatprep.subr.bf16.mxu0 0
        %811 = vmatpush1.bf16.msra.mxu0 %v764
        %812 = vmatprep.subr.bf16.mxu0 0
        %813 = vmatpush1.bf16.msra.mxu0 %v765
        %814 = vmatprep.mubr.bf16.mxu0 %v671
        %815 = vmatmul.mubr.bf16.gmra.mrb[0].mxu0 %v670
        %v816 = vpop.f32.mrb[0].mxu0
        %v817 = vadd.f32 %v616, %v816
        %v818 = vpop.f32.mrb[0].mxu0
        %v819 = vpop.f32.mrb[0].mxu0
        %v820 = vadd.f32 %v619, %v819
        %v821 = vpop.f32.mrb[0].mxu0
        %822 = vmatprep.mubr.bf16.mxu0 %v673
        %823 = vmatmul.mubr.bf16.gmra.mrb[0].mxu0 %v672
        %v824 = vpop.f32.mrb[0].mxu0
        %v825 = vadd.f32 %v624, %v824
        %v826 = vpop.f32.mrb[0].mxu0
        %v827 = vpop.f32.mrb[0].mxu0
        %v828 = vadd.f32 %v627, %v827
        %v829 = vpop.f32.mrb[0].mxu0
        %830 = vmatprep.mubr.bf16.mxu0 %v675
        %831 = vmatmul.mubr.bf16.gmra.mrb[0].mxu0 %v674
        %v832 = vpop.f32.mrb[0].mxu0
        %v833 = vadd.f32 %v632, %v832
        %v834 = vpop.f32.mrb[0].mxu0
        %v835 = vpop.f32.mrb[0].mxu0
        %v836 = vadd.f32 %v635, %v835
        %v837 = vpop.f32.mrb[0].mxu0
        %838 = vmatprep.mubr.bf16.mxu0 %v677
        %839 = vmatmul.mubr.bf16.gmra.mrb[0].mxu0 %v676
        %v840 = vpop.f32.mrb[0].mxu0
        %v841 = vadd.f32 %v640, %v840
        %v842 = vpop.f32.mrb[0].mxu0
        %v843 = vpop.f32.mrb[0].mxu0
        %v844 = vadd.f32 %v643, %v843
        %v845 = vpop.f32.mrb[0].mxu0
        %846 = vdwg.mxu0
        %v847 = vadd.f32 %v509, %v817
        %v848 = vadd.f32 %v510, %v820
        %v849 = vadd.f32 %v511, %v825
        %v850 = vadd.f32 %v512, %v828
        %v851 = vadd.f32 %v513, %v833
        %v852 = vadd.f32 %v514, %v836
        %v853 = vadd.f32 %v515, %v841
        %v854 = vadd.f32 %v516, %v844
        %855 = vst [vmem:[#allocation2] sm:$0xff] %v847
        %856 = vst [vmem:[#allocation2 + $0x8] sm:$0xff] %v848
        %857 = vst [vmem:[#allocation2 + $0x10] sm:$0xff] %v849
        %858 = vst [vmem:[#allocation2 + $0x18] sm:$0xff] %v850
        %859 = vst [vmem:[#allocation2 + $0x20] sm:$0xff] %v851
        %860 = vst [vmem:[#allocation2 + $0x28] sm:$0xff] %v852
        %861 = vst [vmem:[#allocation2 + $0x30] sm:$0xff] %v853
        %862 = vst [vmem:[#allocation2 + $0x38] sm:$0xff] %v854
        %s863 = scalar_lea.vmem %s2, 192
        %v864 = vld [vmem:[%s863] sm:$0xf]
        %v865 = vld [vmem:[%s863 + $0x4] sm:$0xf]
        %v866 = vld [vmem:[%s863 + $0x8] sm:$0xf]
        %v867 = vld [vmem:[%s863 + $0xc] sm:$0xf]
        %v868 = vld [vmem:[%s863 + $0x10] sm:$0xf]
        %v869 = vld [vmem:[%s863 + $0x14] sm:$0xf]
        %v870 = vld [vmem:[%s863 + $0x18] sm:$0xf]
        %v871 = vld [vmem:[%s863 + $0x1c] sm:$0xf]
        %v872 = vld [vmem:[%s863 + $0x20] sm:$0xf]
        %v873 = vld [vmem:[%s863 + $0x24] sm:$0xf]
        %v874 = vld [vmem:[%s863 + $0x28] sm:$0xf]
        %v875 = vld [vmem:[%s863 + $0x2c] sm:$0xf]
        %v876 = vld [vmem:[%s863 + $0x30] sm:$0xf]
        %v877 = vld [vmem:[%s863 + $0x34] sm:$0xf]
        %v878 = vld [vmem:[%s863 + $0x38] sm:$0xf]
        %v879 = vld [vmem:[%s863 + $0x3c] sm:$0xf]
        %v880 = vld [vmem:[%s863 + $0x40] sm:$0xf]
        %v881 = vld [vmem:[%s863 + $0x44] sm:$0xf]
        %v882 = vld [vmem:[%s863 + $0x48] sm:$0xf]
        %v883 = vld [vmem:[%s863 + $0x4c] sm:$0xf]
        %v884 = vld [vmem:[%s863 + $0x50] sm:$0xf]
        %v885 = vld [vmem:[%s863 + $0x54] sm:$0xf]
        %v886 = vld [vmem:[%s863 + $0x58] sm:$0xf]
        %v887 = vld [vmem:[%s863 + $0x5c] sm:$0xf]
        %v888 = vld [vmem:[%s863 + $0x60] sm:$0xf]
        %v889 = vld [vmem:[%s863 + $0x64] sm:$0xf]
        %v890 = vld [vmem:[%s863 + $0x68] sm:$0xf]
        %v891 = vld [vmem:[%s863 + $0x6c] sm:$0xf]
        %v892 = vld [vmem:[%s863 + $0x70] sm:$0xf]
        %v893 = vld [vmem:[%s863 + $0x74] sm:$0xf]
        %v894 = vld [vmem:[%s863 + $0x78] sm:$0xf]
        %v895 = vld [vmem:[%s863 + $0x7c] sm:$0xf]
        %v896 = vld [vmem:[%s863 + $0x80] sm:$0xf]
        %v897 = vld [vmem:[%s863 + $0x84] sm:$0xf]
        %v898 = vld [vmem:[%s863 + $0x88] sm:$0xf]
        %v899 = vld [vmem:[%s863 + $0x8c] sm:$0xf]
        %v900 = vld [vmem:[%s863 + $0x90] sm:$0xf]
        %v901 = vld [vmem:[%s863 + $0x94] sm:$0xf]
        %v902 = vld [vmem:[%s863 + $0x98] sm:$0xf]
        %v903 = vld [vmem:[%s863 + $0x9c] sm:$0xf]
        %v904 = vld [vmem:[%s863 + $0xa0] sm:$0xf]
        %v905 = vld [vmem:[%s863 + $0xa4] sm:$0xf]
        %v906 = vld [vmem:[%s863 + $0xa8] sm:$0xf]
        %v907 = vld [vmem:[%s863 + $0xac] sm:$0xf]
        %v908 = vld [vmem:[%s863 + $0xb0] sm:$0xf]
        %v909 = vld [vmem:[%s863 + $0xb4] sm:$0xf]
        %v910 = vld [vmem:[%s863 + $0xb8] sm:$0xf]
        %v911 = vld [vmem:[%s863 + $0xbc] sm:$0xf]
        %s912 = scalar_lea.vmem %s290, 16
        %v913 = vld [vmem:[%s912] sm:$0xff]
        %v914 = vld [vmem:[%s912 + $0x20] sm:$0xff]
        %v915 = vld [vmem:[%s912 + $0x40] sm:$0xff]
        %v916 = vld [vmem:[%s912 + $0x60] sm:$0xff]
        %v917 = vld [vmem:[%s912 + $0x80] sm:$0xff]
        %v918 = vld [vmem:[%s912 + $0xa0] sm:$0xff]
        %v919 = vld [vmem:[%s912 + $0xc0] sm:$0xff]
        %v920 = vld [vmem:[%s912 + $0xe0] sm:$0xff]
        %v921 = vld [vmem:[%s912] sm:$0xf]
        %v922 = vld [vmem:[%s912 + $0x8] sm:$0x1]
        %v923 = vld [vmem:[%s912 + $0x20] sm:$0xf]
        %v924 = vld [vmem:[%s912 + $0x28] sm:$0x1]
        %v925 = vld [vmem:[%s912 + $0x40] sm:$0xf]
        %v926 = vld [vmem:[%s912 + $0x48] sm:$0x1]
        %v927 = vld [vmem:[%s912 + $0x60] sm:$0xf]
        %v928 = vld [vmem:[%s912 + $0x68] sm:$0x1]
        %v929 = vld [vmem:[%s912 + $0x80] sm:$0xf]
        %v930 = vld [vmem:[%s912 + $0x88] sm:$0x1]
        %v931 = vld [vmem:[%s912 + $0xa0] sm:$0xf]
        %v932 = vld [vmem:[%s912 + $0xa8] sm:$0x1]
        %v933 = vld [vmem:[%s912 + $0xc0] sm:$0xf]
        %v934 = vld [vmem:[%s912 + $0xc8] sm:$0x1]
        %v935 = vld [vmem:[%s912 + $0xe0] sm:$0xf]
        %v936 = vld [vmem:[%s912 + $0xe8] sm:$0x1]
        %v938 = vshrl.u32 %v921, 16
        %v940 = vrot.slane %v938, 4
        %v941 = vshll.u32 %v921, 16
        %v943 = vrot.slane %v941, 5
        %v944 = vor.u32 %v940, %v943
        %v945 = vrot.slane %v944, 4
        %v947 = vshll.u32 %v922, 16
        %v949 = vrot.slane %v947, 5
        %v950 = vsel %vm396, %v945, %v949
        %v952 = vshrl.u32 %v923, 16
        %v954 = vrot.slane %v952, 4
        %v955 = vshll.u32 %v923, 16
        %v957 = vrot.slane %v955, 5
        %v958 = vor.u32 %v954, %v957
        %v959 = vrot.slane %v958, 4
        %v961 = vshll.u32 %v924, 16
        %v963 = vrot.slane %v961, 5
        %v964 = vsel %vm396, %v959, %v963
        %v966 = vshrl.u32 %v925, 16
        %v968 = vrot.slane %v966, 4
        %v969 = vshll.u32 %v925, 16
        %v971 = vrot.slane %v969, 5
        %v972 = vor.u32 %v968, %v971
        %v973 = vrot.slane %v972, 4
        %v975 = vshll.u32 %v926, 16
        %v977 = vrot.slane %v975, 5
        %v978 = vsel %vm396, %v973, %v977
        %v980 = vshrl.u32 %v927, 16
        %v982 = vrot.slane %v980, 4
        %v983 = vshll.u32 %v927, 16
        %v985 = vrot.slane %v983, 5
        %v986 = vor.u32 %v982, %v985
        %v987 = vrot.slane %v986, 4
        %v989 = vshll.u32 %v928, 16
        %v991 = vrot.slane %v989, 5
        %v992 = vsel %vm396, %v987, %v991
        %v994 = vshrl.u32 %v929, 16
        %v996 = vrot.slane %v994, 4
        %v997 = vshll.u32 %v929, 16
        %v999 = vrot.slane %v997, 5
        %v1000 = vor.u32 %v996, %v999
        %v1001 = vrot.slane %v1000, 4
        %v1003 = vshll.u32 %v930, 16
        %v1005 = vrot.slane %v1003, 5
        %v1006 = vsel %vm396, %v1001, %v1005
        %v1008 = vshrl.u32 %v931, 16
        %v1010 = vrot.slane %v1008, 4
        %v1011 = vshll.u32 %v931, 16
        %v1013 = vrot.slane %v1011, 5
        %v1014 = vor.u32 %v1010, %v1013
        %v1015 = vrot.slane %v1014, 4
        %v1017 = vshll.u32 %v932, 16
        %v1019 = vrot.slane %v1017, 5
        %v1020 = vsel %vm396, %v1015, %v1019
        %v1022 = vshrl.u32 %v933, 16
        %v1024 = vrot.slane %v1022, 4
        %v1025 = vshll.u32 %v933, 16
        %v1027 = vrot.slane %v1025, 5
        %v1028 = vor.u32 %v1024, %v1027
        %v1029 = vrot.slane %v1028, 4
        %v1031 = vshll.u32 %v934, 16
        %v1033 = vrot.slane %v1031, 5
        %v1034 = vsel %vm396, %v1029, %v1033
        %v1036 = vshrl.u32 %v935, 16
        %v1038 = vrot.slane %v1036, 4
        %v1039 = vshll.u32 %v935, 16
        %v1041 = vrot.slane %v1039, 5
        %v1042 = vor.u32 %v1038, %v1041
        %v1043 = vrot.slane %v1042, 4
        %v1045 = vshll.u32 %v936, 16
        %v1047 = vrot.slane %v1045, 5
        %v1048 = vsel %vm396, %v1043, %v1047
        %v1049 = vld [vmem:[#allocation2] sm:$0xff]
        %v1050 = vld [vmem:[#allocation2 + $0x8] sm:$0xff]
        %v1051 = vld [vmem:[#allocation2 + $0x10] sm:$0xff]
        %v1052 = vld [vmem:[#allocation2 + $0x18] sm:$0xff]
        %v1053 = vld [vmem:[#allocation2 + $0x20] sm:$0xff]
        %v1054 = vld [vmem:[#allocation2 + $0x28] sm:$0xff]
        %v1055 = vld [vmem:[#allocation2 + $0x30] sm:$0xff]
        %v1056 = vld [vmem:[#allocation2 + $0x38] sm:$0xff]
        %v1057 = vunpack.c.l.b16 %v950
        %v1058 = vunpack.c.l.b16 %v964
        %v1059 = vunpack.c.l.b16 %v978
        %v1060 = vunpack.c.l.b16 %v992
        %v1061 = vunpack.c.l.b16 %v1006
        %v1062 = vunpack.c.l.b16 %v1020
        %v1063 = vunpack.c.l.b16 %v1034
        %v1064 = vunpack.c.l.b16 %v1048
        %v1065 = vpack.c.b16 %v1058, %v1057
        %v1066 = vpack.c.b16 %v1060, %v1059
        %v1067 = vpack.c.b16 %v1062, %v1061
        %v1068 = vpack.c.b16 %v1064, %v1063
        %v1089 = vunpack.c.l.b16 %v896
        %v1090 = vunpack.c.l.b16 %v897
        %v1091 = vunpack.c.l.b16 %v898
        %v1092 = vunpack.c.l.b16 %v899
        %v1093 = vunpack.c.l.b16 %v900
        %v1094 = vunpack.c.l.b16 %v901
        %v1095 = vunpack.c.l.b16 %v902
        %v1096 = vunpack.c.l.b16 %v903
        %v1097 = vunpack.c.l.b16 %v904
        %v1098 = vunpack.c.l.b16 %v905
        %v1099 = vunpack.c.l.b16 %v906
        %v1100 = vunpack.c.l.b16 %v907
        %v1101 = vunpack.c.l.b16 %v908
        %v1102 = vunpack.c.l.b16 %v909
        %v1103 = vunpack.c.l.b16 %v910
        %v1104 = vunpack.c.l.b16 %v911
        %v1105 = vpack.c.b16 %v1090, %v1089
        %v1106 = vpack.c.b16 %v1092, %v1091
        %v1107 = vpack.c.b16 %v1094, %v1093
        %v1108 = vpack.c.b16 %v1096, %v1095
        %v1109 = vpack.c.b16 %v1098, %v1097
        %v1110 = vpack.c.b16 %v1100, %v1099
        %v1111 = vpack.c.b16 %v1102, %v1101
        %v1112 = vpack.c.b16 %v1104, %v1103
        %1121 = vmatprep.subr.bf16.mxu0 0
        %1122 = vmatpush1.bf16.msra.mxu0 %v1105
        %1123 = vmatprep.subr.bf16.mxu0 0
        %1124 = vmatpush1.bf16.msra.mxu0 %v1106
        %1125 = vmatprep.subr.bf16.mxu0 0
        %1126 = vmatpush1.bf16.msra.mxu0 %v1107
        %1127 = vmatprep.subr.bf16.mxu0 0
        %1128 = vmatpush1.bf16.msra.mxu0 %v1108
        %1129 = vmatprep.subr.bf16.mxu0 0
        %1130 = vmatpush1.bf16.msra.mxu0 %v1109
        %1131 = vmatprep.subr.bf16.mxu0 0
        %1132 = vmatpush1.bf16.msra.mxu0 %v1110
        %1133 = vmatprep.subr.bf16.mxu0 0
        %1134 = vmatpush1.bf16.msra.mxu0 %v1111
        %1135 = vmatprep.subr.bf16.mxu0 0
        %1136 = vmatpush1.bf16.msra.mxu0 %v1112
        %1137 = vmatprep.subr.bf16.mxu0 0
        %1138 = vmatpush1.bf16.msra.mxu0 0
        %1139 = vmatprep.subr.bf16.mxu0 0
        %1140 = vmatpush1.bf16.msra.mxu0 0
        %1141 = vmatprep.subr.bf16.mxu0 0
        %1142 = vmatpush1.bf16.msra.mxu0 0
        %1143 = vmatprep.subr.bf16.mxu0 0
        %1144 = vmatpush1.bf16.msra.mxu0 0
        %1145 = vmatprep.subr.bf16.mxu0 0
        %1146 = vmatpush1.bf16.msra.mxu0 0
        %1147 = vmatprep.subr.bf16.mxu0 0
        %1148 = vmatpush1.bf16.msra.mxu0 0
        %1149 = vmatprep.subr.bf16.mxu0 0
        %1150 = vmatpush1.bf16.msra.mxu0 0
        %1151 = vmatprep.subr.bf16.mxu0 0
        %1152 = vmatpush1.bf16.msra.mxu0 0
        %1153 = vmatprep.mubr.bf16.mxu0 0
        %1154 = vmatmul.mubr.bf16.gmra.mrb[0].mxu0 %v1065
        %v1155 = vpop.f32.mrb[0].mxu0
        %v1156 = vadd.f32 0.0, %v1155
        %v1157 = vpop.f32.mrb[0].mxu0
        %v1158 = vpop.f32.mrb[0].mxu0
        %v1159 = vadd.f32 0.0, %v1158
        %v1160 = vpop.f32.mrb[0].mxu0
        %1161 = vmatprep.mubr.bf16.mxu0 0
        %1162 = vmatmul.mubr.bf16.gmra.mrb[0].mxu0 %v1066
        %v1163 = vpop.f32.mrb[0].mxu0
        %v1164 = vadd.f32 0.0, %v1163
        %v1165 = vpop.f32.mrb[0].mxu0
        %v1166 = vpop.f32.mrb[0].mxu0
        %v1167 = vadd.f32 0.0, %v1166
        %v1168 = vpop.f32.mrb[0].mxu0
        %1169 = vmatprep.mubr.bf16.mxu0 0
        %1170 = vmatmul.mubr.bf16.gmra.mrb[0].mxu0 %v1067
        %v1171 = vpop.f32.mrb[0].mxu0
        %v1172 = vadd.f32 0.0, %v1171
        %v1173 = vpop.f32.mrb[0].mxu0
        %v1174 = vpop.f32.mrb[0].mxu0
        %v1175 = vadd.f32 0.0, %v1174
        %v1176 = vpop.f32.mrb[0].mxu0
        %1177 = vmatprep.mubr.bf16.mxu0 0
        %1178 = vmatmul.mubr.bf16.gmra.mrb[0].mxu0 %v1068
        %v1179 = vpop.f32.mrb[0].mxu0
        %v1180 = vadd.f32 0.0, %v1179
        %v1181 = vpop.f32.mrb[0].mxu0
        %v1182 = vpop.f32.mrb[0].mxu0
        %v1183 = vadd.f32 0.0, %v1182
        %v1184 = vpop.f32.mrb[0].mxu0
        %1185 = vdwg.mxu0
        %v1194 = vunpack.c.l.b16 %v913
        %v1195 = vunpack.c.h.b16 %v913
        %v1196 = vunpack.c.l.b16 %v914
        %v1197 = vunpack.c.h.b16 %v914
        %v1198 = vunpack.c.l.b16 %v915
        %v1199 = vunpack.c.h.b16 %v915
        %v1200 = vunpack.c.l.b16 %v916
        %v1201 = vunpack.c.h.b16 %v916
        %v1202 = vunpack.c.l.b16 %v917
        %v1203 = vunpack.c.h.b16 %v917
        %v1204 = vunpack.c.l.b16 %v918
        %v1205 = vunpack.c.h.b16 %v918
        %v1206 = vunpack.c.l.b16 %v919
        %v1207 = vunpack.c.h.b16 %v919
        %v1208 = vunpack.c.l.b16 %v920
        %v1209 = vunpack.c.h.b16 %v920
        %v1210 = vpack.c.b16 %v1196, %v1194
        %v1211 = vpack.c.b16 %v1197, %v1195
        %v1212 = vpack.c.b16 %v1200, %v1198
        %v1213 = vpack.c.b16 %v1201, %v1199
        %v1214 = vpack.c.b16 %v1204, %v1202
        %v1215 = vpack.c.b16 %v1205, %v1203
        %v1216 = vpack.c.b16 %v1208, %v1206
        %v1217 = vpack.c.b16 %v1209, %v1207
        %v1258 = vunpack.c.l.b16 %v864
        %v1259 = vunpack.c.l.b16 %v865
        %v1260 = vunpack.c.l.b16 %v866
        %v1261 = vunpack.c.l.b16 %v867
        %v1262 = vunpack.c.l.b16 %v868
        %v1263 = vunpack.c.l.b16 %v869
        %v1264 = vunpack.c.l.b16 %v870
        %v1265 = vunpack.c.l.b16 %v871
        %v1266 = vunpack.c.l.b16 %v872
        %v1267 = vunpack.c.l.b16 %v873
        %v1268 = vunpack.c.l.b16 %v874
        %v1269 = vunpack.c.l.b16 %v875
        %v1270 = vunpack.c.l.b16 %v876
        %v1271 = vunpack.c.l.b16 %v877
        %v1272 = vunpack.c.l.b16 %v878
        %v1273 = vunpack.c.l.b16 %v879
        %v1274 = vunpack.c.l.b16 %v880
        %v1275 = vunpack.c.l.b16 %v881
        %v1276 = vunpack.c.l.b16 %v882
        %v1277 = vunpack.c.l.b16 %v883
        %v1278 = vunpack.c.l.b16 %v884
        %v1279 = vunpack.c.l.b16 %v885
        %v1280 = vunpack.c.l.b16 %v886
        %v1281 = vunpack.c.l.b16 %v887
        %v1282 = vunpack.c.l.b16 %v888
        %v1283 = vunpack.c.l.b16 %v889
        %v1284 = vunpack.c.l.b16 %v890
        %v1285 = vunpack.c.l.b16 %v891
        %v1286 = vunpack.c.l.b16 %v892
        %v1287 = vunpack.c.l.b16 %v893
        %v1288 = vunpack.c.l.b16 %v894
        %v1289 = vunpack.c.l.b16 %v895
        %v1290 = vpack.c.b16 %v1259, %v1258
        %v1291 = vpack.c.b16 %v1261, %v1260
        %v1292 = vpack.c.b16 %v1263, %v1262
        %v1293 = vpack.c.b16 %v1265, %v1264
        %v1294 = vpack.c.b16 %v1267, %v1266
        %v1295 = vpack.c.b16 %v1269, %v1268
        %v1296 = vpack.c.b16 %v1271, %v1270
        %v1297 = vpack.c.b16 %v1273, %v1272
        %v1298 = vpack.c.b16 %v1275, %v1274
        %v1299 = vpack.c.b16 %v1277, %v1276
        %v1300 = vpack.c.b16 %v1279, %v1278
        %v1301 = vpack.c.b16 %v1281, %v1280
        %v1302 = vpack.c.b16 %v1283, %v1282
        %v1303 = vpack.c.b16 %v1285, %v1284
        %v1304 = vpack.c.b16 %v1287, %v1286
        %v1305 = vpack.c.b16 %v1289, %v1288
        %1322 = vmatprep.subr.bf16.mxu0 0
        %1323 = vmatpush1.bf16.msra.mxu0 %v1290
        %1324 = vmatprep.subr.bf16.mxu0 0
        %1325 = vmatpush1.bf16.msra.mxu0 %v1291
        %1326 = vmatprep.subr.bf16.mxu0 0
        %1327 = vmatpush1.bf16.msra.mxu0 %v1292
        %1328 = vmatprep.subr.bf16.mxu0 0
        %1329 = vmatpush1.bf16.msra.mxu0 %v1293
        %1330 = vmatprep.subr.bf16.mxu0 0
        %1331 = vmatpush1.bf16.msra.mxu0 %v1294
        %1332 = vmatprep.subr.bf16.mxu0 0
        %1333 = vmatpush1.bf16.msra.mxu0 %v1295
        %1334 = vmatprep.subr.bf16.mxu0 0
        %1335 = vmatpush1.bf16.msra.mxu0 %v1296
        %1336 = vmatprep.subr.bf16.mxu0 0
        %1337 = vmatpush1.bf16.msra.mxu0 %v1297
        %1338 = vmatprep.subr.bf16.mxu0 0
        %1339 = vmatpush1.bf16.msra.mxu0 %v1298
        %1340 = vmatprep.subr.bf16.mxu0 0
        %1341 = vmatpush1.bf16.msra.mxu0 %v1299
        %1342 = vmatprep.subr.bf16.mxu0 0
        %1343 = vmatpush1.bf16.msra.mxu0 %v1300
        %1344 = vmatprep.subr.bf16.mxu0 0
        %1345 = vmatpush1.bf16.msra.mxu0 %v1301
        %1346 = vmatprep.subr.bf16.mxu0 0
        %1347 = vmatpush1.bf16.msra.mxu0 %v1302
        %1348 = vmatprep.subr.bf16.mxu0 0
        %1349 = vmatpush1.bf16.msra.mxu0 %v1303
        %1350 = vmatprep.subr.bf16.mxu0 0
        %1351 = vmatpush1.bf16.msra.mxu0 %v1304
        %1352 = vmatprep.subr.bf16.mxu0 0
        %1353 = vmatpush1.bf16.msra.mxu0 %v1305
        %1354 = vmatprep.mubr.bf16.mxu0 %v1211
        %1355 = vmatmul.mubr.bf16.gmra.mrb[0].mxu0 %v1210
        %v1356 = vpop.f32.mrb[0].mxu0
        %v1357 = vadd.f32 %v1156, %v1356
        %v1358 = vpop.f32.mrb[0].mxu0
        %v1359 = vpop.f32.mrb[0].mxu0
        %v1360 = vadd.f32 %v1159, %v1359
        %v1361 = vpop.f32.mrb[0].mxu0
        %1362 = vmatprep.mubr.bf16.mxu0 %v1213
        %1363 = vmatmul.mubr.bf16.gmra.mrb[0].mxu0 %v1212
        %v1364 = vpop.f32.mrb[0].mxu0
        %v1365 = vadd.f32 %v1164, %v1364
        %v1366 = vpop.f32.mrb[0].mxu0
        %v1367 = vpop.f32.mrb[0].mxu0
        %v1368 = vadd.f32 %v1167, %v1367
        %v1369 = vpop.f32.mrb[0].mxu0
        %1370 = vmatprep.mubr.bf16.mxu0 %v1215
        %1371 = vmatmul.mubr.bf16.gmra.mrb[0].mxu0 %v1214
        %v1372 = vpop.f32.mrb[0].mxu0
        %v1373 = vadd.f32 %v1172, %v1372
        %v1374 = vpop.f32.mrb[0].mxu0
        %v1375 = vpop.f32.mrb[0].mxu0
        %v1376 = vadd.f32 %v1175, %v1375
        %v1377 = vpop.f32.mrb[0].mxu0
        %1378 = vmatprep.mubr.bf16.mxu0 %v1217
        %1379 = vmatmul.mubr.bf16.gmra.mrb[0].mxu0 %v1216
        %v1380 = vpop.f32.mrb[0].mxu0
        %v1381 = vadd.f32 %v1180, %v1380
        %v1382 = vpop.f32.mrb[0].mxu0
        %v1383 = vpop.f32.mrb[0].mxu0
        %v1384 = vadd.f32 %v1183, %v1383
        %v1385 = vpop.f32.mrb[0].mxu0
        %1386 = vdwg.mxu0
        %v1387 = vadd.f32 %v1049, %v1357
        %v1388 = vadd.f32 %v1050, %v1360
        %v1389 = vadd.f32 %v1051, %v1365
        %v1390 = vadd.f32 %v1052, %v1368
        %v1391 = vadd.f32 %v1053, %v1373
        %v1392 = vadd.f32 %v1054, %v1376
        %v1393 = vadd.f32 %v1055, %v1381
        %v1394 = vadd.f32 %v1056, %v1384
        %1395 = vst [vmem:[#allocation2] sm:$0xff] %v1387
        %1396 = vst [vmem:[#allocation2 + $0x8] sm:$0xff] %v1388
        %1397 = vst [vmem:[#allocation2 + $0x10] sm:$0xff] %v1389
        %1398 = vst [vmem:[#allocation2 + $0x18] sm:$0xff] %v1390
        %1399 = vst [vmem:[#allocation2 + $0x20] sm:$0xff] %v1391
        %1400 = vst [vmem:[#allocation2 + $0x28] sm:$0xff] %v1392
        %1401 = vst [vmem:[#allocation2 + $0x30] sm:$0xff] %v1393
        %1402 = vst [vmem:[#allocation2 + $0x38] sm:$0xff] %v1394
        %s1403 = scalar_lea.vmem %s2, 384
        %v1404 = vld [vmem:[%s1403] sm:$0xf]
        %v1405 = vld [vmem:[%s1403 + $0x4] sm:$0xf]
        %v1406 = vld [vmem:[%s1403 + $0x8] sm:$0xf]
        %v1407 = vld [vmem:[%s1403 + $0xc] sm:$0xf]
        %v1408 = vld [vmem:[%s1403 + $0x10] sm:$0xf]
        %v1409 = vld [vmem:[%s1403 + $0x14] sm:$0xf]
        %v1410 = vld [vmem:[%s1403 + $0x18] sm:$0xf]
        %v1411 = vld [vmem:[%s1403 + $0x1c] sm:$0xf]
        %v1412 = vld [vmem:[%s1403 + $0x20] sm:$0xf]
        %v1413 = vld [vmem:[%s1403 + $0x24] sm:$0xf]
        %v1414 = vld [vmem:[%s1403 + $0x28] sm:$0xf]
        %v1415 = vld [vmem:[%s1403 + $0x2c] sm:$0xf]
        %v1416 = vld [vmem:[%s1403 + $0x30] sm:$0xf]
        %v1417 = vld [vmem:[%s1403 + $0x34] sm:$0xf]
        %v1418 = vld [vmem:[%s1403 + $0x38] sm:$0xf]
        %v1419 = vld [vmem:[%s1403 + $0x3c] sm:$0xf]
        %v1420 = vld [vmem:[%s1403 + $0x40] sm:$0xf]
        %v1421 = vld [vmem:[%s1403 + $0x44] sm:$0xf]
        %v1422 = vld [vmem:[%s1403 + $0x48] sm:$0xf]
        %v1423 = vld [vmem:[%s1403 + $0x4c] sm:$0xf]
        %v1424 = vld [vmem:[%s1403 + $0x50] sm:$0xf]
        %v1425 = vld [vmem:[%s1403 + $0x54] sm:$0xf]
        %v1426 = vld [vmem:[%s1403 + $0x58] sm:$0xf]
        %v1427 = vld [vmem:[%s1403 + $0x5c] sm:$0xf]
        %v1428 = vld [vmem:[%s1403 + $0x60] sm:$0xf]
        %v1429 = vld [vmem:[%s1403 + $0x64] sm:$0xf]
        %v1430 = vld [vmem:[%s1403 + $0x68] sm:$0xf]
        %v1431 = vld [vmem:[%s1403 + $0x6c] sm:$0xf]
        %v1432 = vld [vmem:[%s1403 + $0x70] sm:$0xf]
        %v1433 = vld [vmem:[%s1403 + $0x74] sm:$0xf]
        %v1434 = vld [vmem:[%s1403 + $0x78] sm:$0xf]
        %v1435 = vld [vmem:[%s1403 + $0x7c] sm:$0xf]
        %v1436 = vld [vmem:[%s1403 + $0x80] sm:$0xf]
        %v1437 = vld [vmem:[%s1403 + $0x84] sm:$0xf]
        %v1438 = vld [vmem:[%s1403 + $0x88] sm:$0xf]
        %v1439 = vld [vmem:[%s1403 + $0x8c] sm:$0xf]
        %v1440 = vld [vmem:[%s1403 + $0x90] sm:$0xf]
        %v1441 = vld [vmem:[%s1403 + $0x94] sm:$0xf]
        %v1442 = vld [vmem:[%s1403 + $0x98] sm:$0xf]
        %v1443 = vld [vmem:[%s1403 + $0x9c] sm:$0xf]
        %v1444 = vld [vmem:[%s1403 + $0xa0] sm:$0xf]
        %v1445 = vld [vmem:[%s1403 + $0xa4] sm:$0xf]
        %v1446 = vld [vmem:[%s1403 + $0xa8] sm:$0xf]
        %v1447 = vld [vmem:[%s1403 + $0xac] sm:$0xf]
        %v1448 = vld [vmem:[%s1403 + $0xb0] sm:$0xf]
        %v1449 = vld [vmem:[%s1403 + $0xb4] sm:$0xf]
        %v1450 = vld [vmem:[%s1403 + $0xb8] sm:$0xf]
        %v1451 = vld [vmem:[%s1403 + $0xbc] sm:$0xf]
        %s1452 = scalar_lea.vmem %s290, 32
        %v1453 = vld [vmem:[%s1452] sm:$0xff]
        %v1454 = vld [vmem:[%s1452 + $0x20] sm:$0xff]
        %v1455 = vld [vmem:[%s1452 + $0x40] sm:$0xff]
        %v1456 = vld [vmem:[%s1452 + $0x60] sm:$0xff]
        %v1457 = vld [vmem:[%s1452 + $0x80] sm:$0xff]
        %v1458 = vld [vmem:[%s1452 + $0xa0] sm:$0xff]
        %v1459 = vld [vmem:[%s1452 + $0xc0] sm:$0xff]
        %v1460 = vld [vmem:[%s1452] sm:$0xf]
        %v1461 = vld [vmem:[%s1452 + $0x8] sm:$0x1]
        %v1462 = vld [vmem:[%s1452 + $0x20] sm:$0xf]
        %v1463 = vld [vmem:[%s1452 + $0x28] sm:$0x1]
        %v1464 = vld [vmem:[%s1452 + $0x40] sm:$0xf]
        %v1465 = vld [vmem:[%s1452 + $0x48] sm:$0x1]
        %v1466 = vld [vmem:[%s1452 + $0x60] sm:$0xf]
        %v1467 = vld [vmem:[%s1452 + $0x68] sm:$0x1]
        %v1468 = vld [vmem:[%s1452 + $0x80] sm:$0xf]
        %v1469 = vld [vmem:[%s1452 + $0x88] sm:$0x1]
        %v1470 = vld [vmem:[%s1452 + $0xa0] sm:$0xf]
        %v1471 = vld [vmem:[%s1452 + $0xa8] sm:$0x1]
        %v1472 = vld [vmem:[%s1452 + $0xc0] sm:$0xf]
        %v1473 = vld [vmem:[%s1452 + $0xc8] sm:$0x1]
        %v1475 = vshrl.u32 %v1460, 16
        %v1477 = vrot.slane %v1475, 4
        %v1478 = vshll.u32 %v1460, 16
        %v1480 = vrot.slane %v1478, 5
        %v1481 = vor.u32 %v1477, %v1480
        %v1482 = vrot.slane %v1481, 4
        %v1484 = vshll.u32 %v1461, 16
        %v1486 = vrot.slane %v1484, 5
        %v1487 = vsel %vm396, %v1482, %v1486
        %v1489 = vshrl.u32 %v1462, 16
        %v1491 = vrot.slane %v1489, 4
        %v1492 = vshll.u32 %v1462, 16
        %v1494 = vrot.slane %v1492, 5
        %v1495 = vor.u32 %v1491, %v1494
        %v1496 = vrot.slane %v1495, 4
        %v1498 = vshll.u32 %v1463, 16
        %v1500 = vrot.slane %v1498, 5
        %v1501 = vsel %vm396, %v1496, %v1500
        %v1503 = vshrl.u32 %v1464, 16
        %v1505 = vrot.slane %v1503, 4
        %v1506 = vshll.u32 %v1464, 16
        %v1508 = vrot.slane %v1506, 5
        %v1509 = vor.u32 %v1505, %v1508
        %v1510 = vrot.slane %v1509, 4
        %v1512 = vshll.u32 %v1465, 16
        %v1514 = vrot.slane %v1512, 5
        %v1515 = vsel %vm396, %v1510, %v1514
        %v1517 = vshrl.u32 %v1466, 16
        %v1519 = vrot.slane %v1517, 4
        %v1520 = vshll.u32 %v1466, 16
        %v1522 = vrot.slane %v1520, 5
        %v1523 = vor.u32 %v1519, %v1522
        %v1524 = vrot.slane %v1523, 4
        %v1526 = vshll.u32 %v1467, 16
        %v1528 = vrot.slane %v1526, 5
        %v1529 = vsel %vm396, %v1524, %v1528
        %v1531 = vshrl.u32 %v1468, 16
        %v1533 = vrot.slane %v1531, 4
        %v1534 = vshll.u32 %v1468, 16
        %v1536 = vrot.slane %v1534, 5
        %v1537 = vor.u32 %v1533, %v1536
        %v1538 = vrot.slane %v1537, 4
        %v1540 = vshll.u32 %v1469, 16
        %v1542 = vrot.slane %v1540, 5
        %v1543 = vsel %vm396, %v1538, %v1542
        %v1545 = vshrl.u32 %v1470, 16
        %v1547 = vrot.slane %v1545, 4
        %v1548 = vshll.u32 %v1470, 16
        %v1550 = vrot.slane %v1548, 5
        %v1551 = vor.u32 %v1547, %v1550
        %v1552 = vrot.slane %v1551, 4
        %v1554 = vshll.u32 %v1471, 16
        %v1556 = vrot.slane %v1554, 5
        %v1557 = vsel %vm396, %v1552, %v1556
        %v1559 = vshrl.u32 %v1472, 16
        %v1561 = vrot.slane %v1559, 4
        %v1562 = vshll.u32 %v1472, 16
        %v1564 = vrot.slane %v1562, 5
        %v1565 = vor.u32 %v1561, %v1564
        %v1566 = vrot.slane %v1565, 4
        %v1568 = vshll.u32 %v1473, 16
        %v1570 = vrot.slane %v1568, 5
        %v1571 = vsel %vm396, %v1566, %v1570
        %v1572 = vld [vmem:[#allocation2] sm:$0xff]
        %v1573 = vld [vmem:[#allocation2 + $0x8] sm:$0xff]
        %v1574 = vld [vmem:[#allocation2 + $0x10] sm:$0xff]
        %v1575 = vld [vmem:[#allocation2 + $0x18] sm:$0xff]
        %v1576 = vld [vmem:[#allocation2 + $0x20] sm:$0xff]
        %v1577 = vld [vmem:[#allocation2 + $0x28] sm:$0xff]
        %v1578 = vld [vmem:[#allocation2 + $0x30] sm:$0xff]
        %v1579 = vunpack.c.l.b16 %v1487
        %v1580 = vunpack.c.l.b16 %v1501
        %v1581 = vunpack.c.l.b16 %v1515
        %v1582 = vunpack.c.l.b16 %v1529
        %v1583 = vunpack.c.l.b16 %v1543
        %v1584 = vunpack.c.l.b16 %v1557
        %v1585 = vunpack.c.l.b16 %v1571
        %v1586 = vpack.c.b16 %v1580, %v1579
        %v1587 = vpack.c.b16 %v1582, %v1581
        %v1588 = vpack.c.b16 %v1584, %v1583
        %v1589 = vpack.c.b16 %v1585, %v1585
        %v1610 = vunpack.c.l.b16 %v1436
        %v1611 = vunpack.c.l.b16 %v1437
        %v1612 = vunpack.c.l.b16 %v1438
        %v1613 = vunpack.c.l.b16 %v1439
        %v1614 = vunpack.c.l.b16 %v1440
        %v1615 = vunpack.c.l.b16 %v1441
        %v1616 = vunpack.c.l.b16 %v1442
        %v1617 = vunpack.c.l.b16 %v1443
        %v1618 = vunpack.c.l.b16 %v1444
        %v1619 = vunpack.c.l.b16 %v1445
        %v1620 = vunpack.c.l.b16 %v1446
        %v1621 = vunpack.c.l.b16 %v1447
        %v1622 = vunpack.c.l.b16 %v1448
        %v1623 = vunpack.c.l.b16 %v1449
        %v1624 = vunpack.c.l.b16 %v1450
        %v1625 = vunpack.c.l.b16 %v1451
        %v1626 = vpack.c.b16 %v1611, %v1610
        %v1627 = vpack.c.b16 %v1613, %v1612
        %v1628 = vpack.c.b16 %v1615, %v1614
        %v1629 = vpack.c.b16 %v1617, %v1616
        %v1630 = vpack.c.b16 %v1619, %v1618
        %v1631 = vpack.c.b16 %v1621, %v1620
        %v1632 = vpack.c.b16 %v1623, %v1622
        %v1633 = vpack.c.b16 %v1625, %v1624
        %1642 = vmatprep.subr.bf16.mxu0 0
        %1643 = vmatpush1.bf16.msra.mxu0 %v1626
        %1644 = vmatprep.subr.bf16.mxu0 0
        %1645 = vmatpush1.bf16.msra.mxu0 %v1627
        %1646 = vmatprep.subr.bf16.mxu0 0
        %1647 = vmatpush1.bf16.msra.mxu0 %v1628
        %1648 = vmatprep.subr.bf16.mxu0 0
        %1649 = vmatpush1.bf16.msra.mxu0 %v1629
        %1650 = vmatprep.subr.bf16.mxu0 0
        %1651 = vmatpush1.bf16.msra.mxu0 %v1630
        %1652 = vmatprep.subr.bf16.mxu0 0
        %1653 = vmatpush1.bf16.msra.mxu0 %v1631
        %1654 = vmatprep.subr.bf16.mxu0 0
        %1655 = vmatpush1.bf16.msra.mxu0 %v1632
        %1656 = vmatprep.subr.bf16.mxu0 0
        %1657 = vmatpush1.bf16.msra.mxu0 %v1633
        %1658 = vmatprep.subr.bf16.mxu0 0
        %1659 = vmatpush1.bf16.msra.mxu0 0
        %1660 = vmatprep.subr.bf16.mxu0 0
        %1661 = vmatpush1.bf16.msra.mxu0 0
        %1662 = vmatprep.subr.bf16.mxu0 0
        %1663 = vmatpush1.bf16.msra.mxu0 0
        %1664 = vmatprep.subr.bf16.mxu0 0
        %1665 = vmatpush1.bf16.msra.mxu0 0
        %1666 = vmatprep.subr.bf16.mxu0 0
        %1667 = vmatpush1.bf16.msra.mxu0 0
        %1668 = vmatprep.subr.bf16.mxu0 0
        %1669 = vmatpush1.bf16.msra.mxu0 0
        %1670 = vmatprep.subr.bf16.mxu0 0
        %1671 = vmatpush1.bf16.msra.mxu0 0
        %1672 = vmatprep.subr.bf16.mxu0 0
        %1673 = vmatpush1.bf16.msra.mxu0 0
        %1674 = vmatprep.mubr.bf16.mxu0 0
        %1675 = vmatmul.mubr.bf16.gmra.mrb[0].mxu0 %v1586
        %v1676 = vpop.f32.mrb[0].mxu0
        %v1677 = vadd.f32 0.0, %v1676
        %v1678 = vpop.f32.mrb[0].mxu0
        %v1679 = vpop.f32.mrb[0].mxu0
        %v1680 = vadd.f32 0.0, %v1679
        %v1681 = vpop.f32.mrb[0].mxu0
        %1682 = vmatprep.mubr.bf16.mxu0 0
        %1683 = vmatmul.mubr.bf16.gmra.mrb[0].mxu0 %v1587
        %v1684 = vpop.f32.mrb[0].mxu0
        %v1685 = vadd.f32 0.0, %v1684
        %v1686 = vpop.f32.mrb[0].mxu0
        %v1687 = vpop.f32.mrb[0].mxu0
        %v1688 = vadd.f32 0.0, %v1687
        %v1689 = vpop.f32.mrb[0].mxu0
        %1690 = vmatprep.mubr.bf16.mxu0 0
        %1691 = vmatmul.mubr.bf16.gmra.mrb[0].mxu0 %v1588
        %v1692 = vpop.f32.mrb[0].mxu0
        %v1693 = vadd.f32 0.0, %v1692
        %v1694 = vpop.f32.mrb[0].mxu0
        %v1695 = vpop.f32.mrb[0].mxu0
        %v1696 = vadd.f32 0.0, %v1695
        %v1697 = vpop.f32.mrb[0].mxu0
        %1698 = vmatprep.mubr.bf16.mxu0 0
        %1699 = vmatmul.mubr.bf16.gmra.mrb[0].mxu0 %v1589
        %v1700 = vpop.f32.mrb[0].mxu0
        %v1701 = vadd.f32 0.0, %v1700
        %v1702 = vpop.f32.mrb[0].mxu0
        %v1703 = vpop.f32.mrb[0].mxu0
        %v1704 = vpop.f32.mrb[0].mxu0
        %1705 = vdwg.mxu0
        %v1713 = vunpack.c.l.b16 %v1453
        %v1714 = vunpack.c.h.b16 %v1453
        %v1715 = vunpack.c.l.b16 %v1454
        %v1716 = vunpack.c.h.b16 %v1454
        %v1717 = vunpack.c.l.b16 %v1455
        %v1718 = vunpack.c.h.b16 %v1455
        %v1719 = vunpack.c.l.b16 %v1456
        %v1720 = vunpack.c.h.b16 %v1456
        %v1721 = vunpack.c.l.b16 %v1457
        %v1722 = vunpack.c.h.b16 %v1457
        %v1723 = vunpack.c.l.b16 %v1458
        %v1724 = vunpack.c.h.b16 %v1458
        %v1725 = vunpack.c.l.b16 %v1459
        %v1726 = vunpack.c.h.b16 %v1459
        %v1727 = vpack.c.b16 %v1715, %v1713
        %v1728 = vpack.c.b16 %v1716, %v1714
        %v1729 = vpack.c.b16 %v1719, %v1717
        %v1730 = vpack.c.b16 %v1720, %v1718
        %v1731 = vpack.c.b16 %v1723, %v1721
        %v1732 = vpack.c.b16 %v1724, %v1722
        %v1733 = vpack.c.b16 %v1725, %v1725
        %v1734 = vpack.c.b16 %v1726, %v1726
        %v1775 = vunpack.c.l.b16 %v1404
        %v1776 = vunpack.c.l.b16 %v1405
        %v1777 = vunpack.c.l.b16 %v1406
        %v1778 = vunpack.c.l.b16 %v1407
        %v1779 = vunpack.c.l.b16 %v1408
        %v1780 = vunpack.c.l.b16 %v1409
        %v1781 = vunpack.c.l.b16 %v1410
        %v1782 = vunpack.c.l.b16 %v1411
        %v1783 = vunpack.c.l.b16 %v1412
        %v1784 = vunpack.c.l.b16 %v1413
        %v1785 = vunpack.c.l.b16 %v1414
        %v1786 = vunpack.c.l.b16 %v1415
        %v1787 = vunpack.c.l.b16 %v1416
        %v1788 = vunpack.c.l.b16 %v1417
        %v1789 = vunpack.c.l.b16 %v1418
        %v1790 = vunpack.c.l.b16 %v1419
        %v1791 = vunpack.c.l.b16 %v1420
        %v1792 = vunpack.c.l.b16 %v1421
        %v1793 = vunpack.c.l.b16 %v1422
        %v1794 = vunpack.c.l.b16 %v1423
        %v1795 = vunpack.c.l.b16 %v1424
        %v1796 = vunpack.c.l.b16 %v1425
        %v1797 = vunpack.c.l.b16 %v1426
        %v1798 = vunpack.c.l.b16 %v1427
        %v1799 = vunpack.c.l.b16 %v1428
        %v1800 = vunpack.c.l.b16 %v1429
        %v1801 = vunpack.c.l.b16 %v1430
        %v1802 = vunpack.c.l.b16 %v1431
        %v1803 = vunpack.c.l.b16 %v1432
        %v1804 = vunpack.c.l.b16 %v1433
        %v1805 = vunpack.c.l.b16 %v1434
        %v1806 = vunpack.c.l.b16 %v1435
        %v1807 = vpack.c.b16 %v1776, %v1775
        %v1808 = vpack.c.b16 %v1778, %v1777
        %v1809 = vpack.c.b16 %v1780, %v1779
        %v1810 = vpack.c.b16 %v1782, %v1781
        %v1811 = vpack.c.b16 %v1784, %v1783
        %v1812 = vpack.c.b16 %v1786, %v1785
        %v1813 = vpack.c.b16 %v1788, %v1787
        %v1814 = vpack.c.b16 %v1790, %v1789
        %v1815 = vpack.c.b16 %v1792, %v1791
        %v1816 = vpack.c.b16 %v1794, %v1793
        %v1817 = vpack.c.b16 %v1796, %v1795
        %v1818 = vpack.c.b16 %v1798, %v1797
        %v1819 = vpack.c.b16 %v1800, %v1799
        %v1820 = vpack.c.b16 %v1802, %v1801
        %v1821 = vpack.c.b16 %v1804, %v1803
        %v1822 = vpack.c.b16 %v1806, %v1805
        %1839 = vmatprep.subr.bf16.mxu0 0
        %1840 = vmatpush1.bf16.msra.mxu0 %v1807
        %1841 = vmatprep.subr.bf16.mxu0 0
        %1842 = vmatpush1.bf16.msra.mxu0 %v1808
        %1843 = vmatprep.subr.bf16.mxu0 0
        %1844 = vmatpush1.bf16.msra.mxu0 %v1809
        %1845 = vmatprep.subr.bf16.mxu0 0
        %1846 = vmatpush1.bf16.msra.mxu0 %v1810
        %1847 = vmatprep.subr.bf16.mxu0 0
        %1848 = vmatpush1.bf16.msra.mxu0 %v1811
        %1849 = vmatprep.subr.bf16.mxu0 0
        %1850 = vmatpush1.bf16.msra.mxu0 %v1812
        %1851 = vmatprep.subr.bf16.mxu0 0
        %1852 = vmatpush1.bf16.msra.mxu0 %v1813
        %1853 = vmatprep.subr.bf16.mxu0 0
        %1854 = vmatpush1.bf16.msra.mxu0 %v1814
        %1855 = vmatprep.subr.bf16.mxu0 0
        %1856 = vmatpush1.bf16.msra.mxu0 %v1815
        %1857 = vmatprep.subr.bf16.mxu0 0
        %1858 = vmatpush1.bf16.msra.mxu0 %v1816
        %1859 = vmatprep.subr.bf16.mxu0 0
        %1860 = vmatpush1.bf16.msra.mxu0 %v1817
        %1861 = vmatprep.subr.bf16.mxu0 0
        %1862 = vmatpush1.bf16.msra.mxu0 %v1818
        %1863 = vmatprep.subr.bf16.mxu0 0
        %1864 = vmatpush1.bf16.msra.mxu0 %v1819
        %1865 = vmatprep.subr.bf16.mxu0 0
        %1866 = vmatpush1.bf16.msra.mxu0 %v1820
        %1867 = vmatprep.subr.bf16.mxu0 0
        %1868 = vmatpush1.bf16.msra.mxu0 %v1821
        %1869 = vmatprep.subr.bf16.mxu0 0
        %1870 = vmatpush1.bf16.msra.mxu0 %v1822
        %1871 = vmatprep.mubr.bf16.mxu0 %v1728
        %1872 = vmatmul.mubr.bf16.gmra.mrb[0].mxu0 %v1727
        %v1873 = vpop.f32.mrb[0].mxu0
        %v1874 = vadd.f32 %v1677, %v1873
        %v1875 = vpop.f32.mrb[0].mxu0
        %v1876 = vpop.f32.mrb[0].mxu0
        %v1877 = vadd.f32 %v1680, %v1876
        %v1878 = vpop.f32.mrb[0].mxu0
        %1879 = vmatprep.mubr.bf16.mxu0 %v1730
        %1880 = vmatmul.mubr.bf16.gmra.mrb[0].mxu0 %v1729
        %v1881 = vpop.f32.mrb[0].mxu0
        %v1882 = vadd.f32 %v1685, %v1881
        %v1883 = vpop.f32.mrb[0].mxu0
        %v1884 = vpop.f32.mrb[0].mxu0
        %v1885 = vadd.f32 %v1688, %v1884
        %v1886 = vpop.f32.mrb[0].mxu0
        %1887 = vmatprep.mubr.bf16.mxu0 %v1732
        %1888 = vmatmul.mubr.bf16.gmra.mrb[0].mxu0 %v1731
        %v1889 = vpop.f32.mrb[0].mxu0
        %v1890 = vadd.f32 %v1693, %v1889
        %v1891 = vpop.f32.mrb[0].mxu0
        %v1892 = vpop.f32.mrb[0].mxu0
        %v1893 = vadd.f32 %v1696, %v1892
        %v1894 = vpop.f32.mrb[0].mxu0
        %1895 = vmatprep.mubr.bf16.mxu0 %v1734
        %1896 = vmatmul.mubr.bf16.gmra.mrb[0].mxu0 %v1733
        %v1897 = vpop.f32.mrb[0].mxu0
        %v1898 = vadd.f32 %v1701, %v1897
        %v1899 = vpop.f32.mrb[0].mxu0
        %v1900 = vpop.f32.mrb[0].mxu0
        %v1901 = vpop.f32.mrb[0].mxu0
        %1902 = vdwg.mxu0
        %v1903 = vadd.f32 %v1572, %v1874
        %v1904 = vadd.f32 %v1573, %v1877
        %v1905 = vadd.f32 %v1574, %v1882
        %v1906 = vadd.f32 %v1575, %v1885
        %v1907 = vadd.f32 %v1576, %v1890
        %v1908 = vadd.f32 %v1577, %v1893
        %v1909 = vadd.f32 %v1578, %v1898
        %1910 = vst [vmem:[#allocation2] sm:$0xff] %v1903
        %1911 = vst [vmem:[#allocation2 + $0x8] sm:$0xff] %v1904
        %1912 = vst [vmem:[#allocation2 + $0x10] sm:$0xff] %v1905
        %1913 = vst [vmem:[#allocation2 + $0x18] sm:$0xff] %v1906
        %1914 = vst [vmem:[#allocation2 + $0x20] sm:$0xff] %v1907
        %1915 = vst [vmem:[#allocation2 + $0x28] sm:$0xff] %v1908
        %1916 = vst [vmem:[#allocation2 + $0x30] sm:$0xff] %v1909
        %v1917 = vld [vmem:[%s309] sm:$0xff]
        %v1918 = vld [vmem:[%s309] sm:$0xf]
        %v1919 = vld [vmem:[%s309 + $0x8] sm:$0x1]
        %v1920 = vld [vmem:[#allocation2 + $0x38] sm:$0xff]
        %v1923 = vunpack.c.l.b16 %v1918
        %v1924 = vunpack.c.l.b16 %v1919
        %v1925 = vpack.c.b16 %v1924, %v1923
        %v1927 = vshrl.u32 %v1925, 16
        %v1929 = vshll.u32 %v1925, 16
        %v1931 = vrot.slane %v1929, 1
        %v1932 = vor.u32 %v1927, %v1931
        %1934 = vmatprep.subr.bf16.mxu0 0
        %1935 = vmatpush1.bf16.msra.mxu0 %v1626
        %1936 = vmatprep.subr.bf16.mxu0 0
        %1937 = vmatpush1.bf16.msra.mxu0 %v1627
        %1938 = vmatprep.subr.bf16.mxu0 0
        %1939 = vmatpush1.bf16.msra.mxu0 %v1628
        %1940 = vmatprep.subr.bf16.mxu0 0
        %1941 = vmatpush1.bf16.msra.mxu0 %v1629
        %1942 = vmatprep.subr.bf16.mxu0 0
        %1943 = vmatpush1.bf16.msra.mxu0 %v1630
        %1944 = vmatprep.subr.bf16.mxu0 0
        %1945 = vmatpush1.bf16.msra.mxu0 %v1631
        %1946 = vmatprep.subr.bf16.mxu0 0
        %1947 = vmatpush1.bf16.msra.mxu0 %v1632
        %1948 = vmatprep.subr.bf16.mxu0 0
        %1949 = vmatpush1.bf16.msra.mxu0 %v1633
        %1950 = vmatprep.subr.bf16.mxu0 0
        %1951 = vmatpush1.bf16.msra.mxu0 0
        %1952 = vmatprep.subr.bf16.mxu0 0
        %1953 = vmatpush1.bf16.msra.mxu0 0
        %1954 = vmatprep.subr.bf16.mxu0 0
        %1955 = vmatpush1.bf16.msra.mxu0 0
        %1956 = vmatprep.subr.bf16.mxu0 0
        %1957 = vmatpush1.bf16.msra.mxu0 0
        %1958 = vmatprep.subr.bf16.mxu0 0
        %1959 = vmatpush1.bf16.msra.mxu0 0
        %1960 = vmatprep.subr.bf16.mxu0 0
        %1961 = vmatpush1.bf16.msra.mxu0 0
        %1962 = vmatprep.subr.bf16.mxu0 0
        %1963 = vmatpush1.bf16.msra.mxu0 0
        %1964 = vmatprep.subr.bf16.mxu0 0
        %1965 = vmatpush1.bf16.msra.mxu0 0
        %1966 = vmatprep.mubr.bf16.mxu0 0
        %1967 = vmatmul.mubr.bf16.gmra.mrb[0].mxu0 %v1932
        %v1968 = vpop.f32.mrb[0].mxu0
        %v1969 = vadd.f32 0.0, %v1968
        %v1970 = vpop.f32.mrb[0].mxu0
        %v1971 = vpop.f32.mrb[0].mxu0
        %v1972 = vpop.f32.mrb[0].mxu0
        %1973 = vdwg.mxu0
        %v1975 = vunpack.c.l.b16 %v1917
        %v1976 = vunpack.c.h.b16 %v1917
        %v1977 = vpack.c.b16 %v1975, %v1975
        %v1978 = vpack.c.b16 %v1976, %v1976
        %1981 = vmatprep.subr.bf16.mxu0 0
        %1982 = vmatpush1.bf16.msra.mxu0 %v1807
        %1983 = vmatprep.subr.bf16.mxu0 0
        %1984 = vmatpush1.bf16.msra.mxu0 %v1808
        %1985 = vmatprep.subr.bf16.mxu0 0
        %1986 = vmatpush1.bf16.msra.mxu0 %v1809
        %1987 = vmatprep.subr.bf16.mxu0 0
        %1988 = vmatpush1.bf16.msra.mxu0 %v1810
        %1989 = vmatprep.subr.bf16.mxu0 0
        %1990 = vmatpush1.bf16.msra.mxu0 %v1811
        %1991 = vmatprep.subr.bf16.mxu0 0
        %1992 = vmatpush1.bf16.msra.mxu0 %v1812
        %1993 = vmatprep.subr.bf16.mxu0 0
        %1994 = vmatpush1.bf16.msra.mxu0 %v1813
        %1995 = vmatprep.subr.bf16.mxu0 0
        %1996 = vmatpush1.bf16.msra.mxu0 %v1814
        %1997 = vmatprep.subr.bf16.mxu0 0
        %1998 = vmatpush1.bf16.msra.mxu0 %v1815
        %1999 = vmatprep.subr.bf16.mxu0 0
        %2000 = vmatpush1.bf16.msra.mxu0 %v1816
        %2001 = vmatprep.subr.bf16.mxu0 0
        %2002 = vmatpush1.bf16.msra.mxu0 %v1817
        %2003 = vmatprep.subr.bf16.mxu0 0
        %2004 = vmatpush1.bf16.msra.mxu0 %v1818
        %2005 = vmatprep.subr.bf16.mxu0 0
        %2006 = vmatpush1.bf16.msra.mxu0 %v1819
        %2007 = vmatprep.subr.bf16.mxu0 0
        %2008 = vmatpush1.bf16.msra.mxu0 %v1820
        %2009 = vmatprep.subr.bf16.mxu0 0
        %2010 = vmatpush1.bf16.msra.mxu0 %v1821
        %2011 = vmatprep.subr.bf16.mxu0 0
        %2012 = vmatpush1.bf16.msra.mxu0 %v1822
        %2013 = vmatprep.mubr.bf16.mxu0 %v1978
        %2014 = vmatmul.mubr.bf16.gmra.mrb[0].mxu0 %v1977
        %v2015 = vpop.f32.mrb[0].mxu0
        %v2016 = vadd.f32 %v1969, %v2015
        %v2017 = vpop.f32.mrb[0].mxu0
        %v2018 = vpop.f32.mrb[0].mxu0
        %v2019 = vpop.f32.mrb[0].mxu0
        %2020 = vdwg.mxu0
        %v2021 = vadd.f32 %v1920, %v2016
        %2022 = vst [vmem:[#allocation2 + $0x38] sm:$0xff] %v2021
        %v2023 = vld [vmem:[#allocation2] sm:$0xff]
        %v2024 = vld [vmem:[#allocation2 + $0x8] sm:$0xff]
        %v2025 = vld [vmem:[#allocation2 + $0x10] sm:$0xff]
        %v2026 = vld [vmem:[#allocation2 + $0x18] sm:$0xff]
        %v2027 = vld [vmem:[#allocation2 + $0x20] sm:$0xff]
        %v2028 = vld [vmem:[#allocation2 + $0x28] sm:$0xff]
        %v2029 = vld [vmem:[#allocation2 + $0x30] sm:$0xff]
        %v2030 = vld [vmem:[#allocation2 + $0x38] sm:$0xff]
        %v2031 = vld [vmem:[%s3] sm:$0x1]
        %v2033 = vlaneseq
        %v2034 = vshrl.u32 %v2033, 7
        %v2035 = vsub.s32 0, %v2034
        %v2036 = vrot.slane %v2031, %v2035
        %v2038 = vadd.f32 %v2023, %v2036
        %v2039 = vadd.f32 %v2024, %v2036
        %v2040 = vadd.f32 %v2025, %v2036
        %v2041 = vadd.f32 %v2026, %v2036
        %v2042 = vadd.f32 %v2027, %v2036
        %v2043 = vadd.f32 %v2028, %v2036
        %v2044 = vadd.f32 %v2029, %v2036
        %v2045 = vadd.f32 %v2030, %v2036
        %2046 = vst [vmem:[%s273] sm:$0xff] %v2038
        %2047 = vst [vmem:[%s273 + $0x8] sm:$0xff] %v2039
        %2048 = vst [vmem:[%s273 + $0x10] sm:$0xff] %v2040
        %2049 = vst [vmem:[%s273 + $0x18] sm:$0xff] %v2041
        %2050 = vst [vmem:[%s273 + $0x20] sm:$0xff] %v2042
        %2051 = vst [vmem:[%s273 + $0x28] sm:$0xff] %v2043
        %2052 = vst [vmem:[%s273 + $0x30] sm:$0xff] %v2044
        %2053 = vst [vmem:[%s273 + $0x38] sm:$0xff] %v2045
        %s2054 = sand.u32 %s142, 1
        %s2055 = scalar_lea.sflag [#allocation4], %s2054
        %s2056 = sand.u32 %s142, 1
        %s2057 = smul.addr %s2056, 64
        %s2058 = scalar_lea.vmem [#allocation3], %s2057
        // Predicated region
        $region37: #{downsample_conv.1} parent=35 // pred_check
          %p2059 = pneg %p152
        $region38: #{downsample_conv.1} parent=35 // pred_check_branch
          %2061 = sbr.rel (%p2059) target = $region40
        $region39: #{downsample_conv.1} parent=35 // pred_region
          %s2062 = smul.u32 8, %s23
          %s2064 = ssub.s32 1024, 1024
          %2065 = vsyncadd %s2055, %s2064
          %s2066 = smul.addr %s22, 8
          %s2067 = sadd.s32 %s2062, %s2066
          %s2068 = smul.addr %s2067, 128
          %s2069 = scalar_lea.hbm %s4, %s2068
          %s2070 = sshll.u32 %s2058, 4
          %s2071 = int_to_ptr.vmem [resolvable:$true] %s2070
          %2076 = dma.vmem_to_hbm [thread:$0]  %s2071, 1024, %s2069, %s2055, 128, 128, 8
        $region40: #{downsample_conv.1} parent=35 // pred_fallthru
          _
      $region36: #{downsample_conv.1} parent=5 // pred_fallthru
        _
      %p2077 = scmp.le.s32.totalorder 2, %s13
      // Predicated region
      $region41: #{downsample_conv.1} parent=5 // pred_check
        %p2078 = pneg %p2077
      $region42: #{downsample_conv.1} parent=5 // pred_check_branch
        %2080 = sbr.rel (%p2078) target = $region44
      $region43: #{downsample_conv.1} parent=5 // pred_region
        %s2081 = ssub.s32 %s13, 2
        // Predicated region
        $region45: #{downsample_conv.1} parent=43 // pred_check
          %p2082 = pneg %p158
        $region46: #{downsample_conv.1} parent=43 // pred_check_branch
          %2084 = sbr.rel (%p2082) target = $region48
        $region47: #{downsample_conv.1} parent=43 // pred_region
          %s2085 = sand.u32 %s143, 1
          %s2086 = scalar_lea.sflag [#allocation4], %s2085
          %s2087 = sand.u32 %s143, 1
          %s2088 = smul.addr %s2087, 64
          %s2089 = scalar_lea.vmem [#allocation3], %s2088
          %2090 = dma.done %s2086, 1024
        $region48: #{downsample_conv.1} parent=43 // pred_fallthru
          _
      $region44: #{downsample_conv.1} parent=5 // pred_fallthru
        _
    $region6: #{downsample_conv.1} parent=1 // loop_footer
      %s17 = sadd.s32 1, %s13
    $region7: #{downsample_conv.1} parent=1 // loop_footer_branch
      %12 = sbr.rel target = $region3
    $region8: #{downsample_conv.1} parent=1 // loop_exit
      _
    %2091 = vsyncpa [#allocation4], 1
    %s2092 = scalar_lea.sflag [#allocation4], 1
    %2093 = vsyncpa %s2092, 1

</llo_original>
